<compile_context>
chip_gen: v5e
topology: v5e:2x2
jax: 0.10.0
libtpu: 0.0.40
codegen_flags: <defaults>
</compile_context>

<pallas_src>
import functools
import math

import numpy as np

import jax
import jax.numpy as jnp
from jax.experimental import pallas as pl
from jax.experimental.pallas import tpu as pltpu


def _round_up(v, m):
    return ((v + m - 1) // m) * m


# ----------------------------------------------------------------------------
# Kernel
# ----------------------------------------------------------------------------
def _rgcn_kernel(tid_ref, ktile_ref, cnt_ref,          # SMEM scalar prefetch
                 a_ref, x_ref, w_ref, root_ref, bias_ref, inv_ref,
                 o_ref, h_ref, *, R, max_kt, tile_m, tile_k):
    i = pl.program_id(0)        # row tile          ("parallel")
    r = pl.program_id(1)        # relation          (reduction)
    t = pl.program_id(2)        # compacted col-tile step (reduction)

    grp = i * R + r
    cnt = cnt_ref[grp]          # number of nonzero A col tiles for (i, r)

    # NOTE: statement order below matters when max_kt == 1 (init, zero-h,
    # accumulate, W_r epilogue, ReLU all fire in the same grid step).

    # First reduction step for this row tile: init output with root term + bias.
    @pl.when(jnp.logical_and(r == 0, t == 0))
    def _():
        row0 = pl.multiple_of(i * tile_m, tile_m)
        xi = x_ref[pl.ds(row0, tile_m), :]
        o_ref[...] = (
            jnp.dot(xi, root_ref[...], preferred_element_type=jnp.float32)
            + bias_ref[...])

    # Start of each relation's (compacted) column sweep: zero the accumulator.
    @pl.when(t == 0)
    def _():
        h_ref[...] = jnp.zeros_like(h_ref)

    # Aggregate-first: h += A_r[i, kt] @ x[kt].  Steps with t >= cnt are pure
    # padding: their A block index repeats the previous one (no DMA) and this
    # accumulate is skipped.
    @pl.when(t < cnt)
    def _():
        ktile = ktile_ref[grp * max_kt + t]
        col0 = pl.multiple_of(ktile * tile_k, tile_k)
        xj = x_ref[pl.ds(col0, tile_k), :]
        h_ref[...] += jnp.dot(a_ref[...], xj,
                              preferred_element_type=jnp.float32)

    # End of relation r's sweep: mean-normalize (1/deg) and apply W_r.
    @pl.when(t == max_kt - 1)
    def _():
        hr = (h_ref[...] * inv_ref[...]).astype(jnp.bfloat16)
        o_ref[...] += jnp.dot(hr, w_ref[...],
                              preferred_element_type=jnp.float32)

    # Very last reduction step: post-layer ReLU in place.
    @pl.when(jnp.logical_and(r == pl.num_programs(1) - 1, t == max_kt - 1))
    def _():
        o_ref[...] = jnp.maximum(o_ref[...], 0.0)


# ----------------------------------------------------------------------------
# Host-side block-sparse metadata (numpy; static graph structure)
# ----------------------------------------------------------------------------
def _build_block_meta(edge_index, edge_type, N, R, tile_m, tile_k):
    src = np.asarray(jax.device_get(edge_index[0])).astype(np.int64)
    dst = np.asarray(jax.device_get(edge_index[1])).astype(np.int64)
    typ = np.asarray(jax.device_get(edge_type)).astype(np.int64)

    tile_lcm = tile_m * tile_k // math.gcd(tile_m, tile_k)
    Np = _round_up(max(N, 1), tile_lcm)
    n_i = Np // tile_m
    n_kt = Np // tile_k
    G = n_i * R

    ti = dst // tile_m                      # row tile of each edge
    tk = src // tile_k                      # col tile of each edge
    key = (ti * R + typ) * n_kt + tk        # flat (row_tile, relation, col_tile)
    uniq = np.unique(key)                   # sorted nonzero tiles
    T = max(int(uniq.size), 1)

    # per-edge compact tile id (position of its (i, r, kt) key in `uniq`)
    edge_tid = np.searchsorted(uniq, key).astype(np.int32)

    # per-(row_tile, relation) lists of nonzero col tiles + their compact ids
    g_i = uniq // (R * n_kt)
    g_r = (uniq // n_kt) % R
    g_k = (uniq % n_kt).astype(np.int32)
    group = (g_i * R + g_r).astype(np.int64)

    cnt = np.zeros(G, dtype=np.int32)
    np.add.at(cnt, group, 1)
    max_kt = max(int(cnt.max()) if cnt.size else 1, 1)

    a_tid = np.zeros((G, max_kt), dtype=np.int32)
    a_kt = np.zeros((G, max_kt), dtype=np.int32)
    if uniq.size:
        start = np.concatenate([[0], np.cumsum(cnt)])[:-1]
        slot = np.arange(uniq.size) - start[group]
        a_tid[group, slot] = np.arange(uniq.size, dtype=np.int32)
        a_kt[group, slot] = g_k
        # Pad with the last valid entry so padded steps revisit the same block
        # (Pallas skips the DMA when the block index is unchanged).
        rows = np.arange(G)
        last_tid = a_tid[rows, np.maximum(cnt - 1, 0)]
        last_kt = a_kt[rows, np.maximum(cnt - 1, 0)]
        pad = np.arange(max_kt)[None, :] >= cnt[:, None]
        a_tid = np.where(pad, last_tid[:, None], a_tid)
        a_kt = np.where(pad, last_kt[:, None], a_kt)

    return Np, n_i, T, max_kt, edge_tid, a_tid.reshape(-1), a_kt.reshape(-1), cnt


# ----------------------------------------------------------------------------
# Jitted Pallas wrapper
# ----------------------------------------------------------------------------
@functools.partial(
    jax.jit,
    static_argnames=("R", "T", "tile_m", "tile_k", "Np", "max_kt", "n_i"))
def _rgcn_pallas(x, src, dst, edge_type, edge_tid, a_tid, a_kt, cnt,
                 weight, root, bias, *, R, T, tile_m, tile_k, Np, max_kt, n_i):
    N, Cin = x.shape
    Cout = root.shape[1]
    Cin_p = _round_up(Cin, 128)
    Cout_p = _round_up(Cout, 128)

    ones = jnp.ones(edge_type.shape, jnp.float32)

    # Compact block-sparse adjacency: only nonzero tiles exist in HBM.
    A_c = (jnp.zeros((T, tile_m, tile_k), jnp.float32)
           .at[edge_tid, dst % tile_m, src % tile_k].add(ones)
           ).astype(jnp.bfloat16)

    # Per-(relation, node) in-degree -> folded mean normalization.
    deg = jnp.zeros((R, Np), jnp.float32).at[edge_type, dst].add(ones)
    inv_deg = (1.0 / jnp.maximum(deg, 1.0))[:, :, None]            # (R, Np, 1)

    # Lane-dense padded operands (channel dims padded to multiples of 128).
    x_p = jnp.zeros((Np, Cin_p), jnp.bfloat16).at[:N, :Cin].set(
        x.astype(jnp.bfloat16))
    w_p = jnp.zeros((R, Cin_p, Cout_p), jnp.bfloat16).at[:, :Cin, :Cout].set(
        weight.astype(jnp.bfloat16))
    root_p = jnp.zeros((Cin_p, Cout_p), jnp.bfloat16).at[:Cin, :Cout].set(
        root.astype(jnp.bfloat16))
    bias_p = jnp.zeros((1, Cout_p), jnp.float32).at[0, :Cout].set(
        bias.astype(jnp.float32))

    flops = (2 * T * tile_m * tile_k * Cin_p          # A_r @ x (nonzero tiles)
             + 2 * n_i * R * tile_m * Cin_p * Cout_p  # h_r @ W_r
             + 2 * Np * Cin_p * Cout_p)               # x @ W_root
    bytes_accessed = (2 * T * tile_m * tile_k         # A (bf16, compact)
                      + 2 * Np * Cin_p                # x (resident, once)
                      + 2 * R * Cin_p * Cout_p        # W
                      + 4 * R * Np                    # 1/deg
                      + 4 * Np * Cout_p)              # output

    kernel = functools.partial(_rgcn_kernel, R=R, max_kt=max_kt,
                               tile_m=tile_m, tile_k=tile_k)

    out_p = pl.pallas_call(
        kernel,
        out_shape=jax.ShapeDtypeStruct((Np, Cout_p), jnp.float32),
        grid_spec=pltpu.PrefetchScalarGridSpec(
            num_scalar_prefetch=3,
            grid=(n_i, R, max_kt),
            in_specs=[
                # compact A tile, selected via the scalar-prefetched id list
                pl.BlockSpec(
                    (None, tile_m, tile_k),
                    lambda i, r, t, tid_r, kt_r, cnt_r:
                        (tid_r[(i * R + r) * max_kt + t], 0, 0)),
                # x: fully resident in VMEM (constant index -> single DMA)
                pl.BlockSpec((Np, Cin_p),
                             lambda i, r, t, tid_r, kt_r, cnt_r: (0, 0)),
                # W[r]
                pl.BlockSpec((None, Cin_p, Cout_p),
                             lambda i, r, t, tid_r, kt_r, cnt_r: (r, 0, 0)),
                # W_root
                pl.BlockSpec((Cin_p, Cout_p),
                             lambda i, r, t, tid_r, kt_r, cnt_r: (0, 0)),
                # bias
                pl.BlockSpec((1, Cout_p),
                             lambda i, r, t, tid_r, kt_r, cnt_r: (0, 0)),
                # 1/deg
                pl.BlockSpec((None, tile_m, 1),
                             lambda i, r, t, tid_r, kt_r, cnt_r: (r, i, 0)),
            ],
            out_specs=pl.BlockSpec(
                (tile_m, Cout_p),
                lambda i, r, t, tid_r, kt_r, cnt_r: (i, 0)),
            scratch_shapes=[pltpu.VMEM((tile_m, Cin_p), jnp.float32)],
        ),
        compiler_params=pltpu.CompilerParams(
            dimension_semantics=("parallel", "arbitrary", "arbitrary"),
            vmem_limit_bytes=32 * 1024 * 1024,
        ),
        cost_estimate=pl.CostEstimate(
            flops=flops, transcendentals=0, bytes_accessed=bytes_accessed),
    )(a_tid, a_kt, cnt, A_c, x_p, w_p, root_p, bias_p, inv_deg)

    return out_p[:N, :Cout].astype(x.dtype)


def rgcn_forward(x, edge_index, edge_type, weight, root, bias, *,
                 num_relations, tile_m=256, tile_k=512):
    """x: [N, Cin] f32, edge_index: [2, E] i32, edge_type: [E] i32."""
    N = x.shape[0]
    R = num_relations
    Np, n_i, T, max_kt, edge_tid, a_tid, a_kt, cnt = _build_block_meta(
        edge_index, edge_type, N, R, tile_m, tile_k)
    return _rgcn_pallas(
        x, edge_index[0], edge_index[1], edge_type,
        jnp.asarray(edge_tid), jnp.asarray(a_tid), jnp.asarray(a_kt),
        jnp.asarray(cnt),
        weight, root, bias,
        R=R, T=T, tile_m=tile_m, tile_k=tile_k, Np=Np, max_kt=max_kt, n_i=n_i)


# ----------------------------------------------------------------------------
# Pure-JAX reference
# ----------------------------------------------------------------------------
def _reference(x, edge_index, edge_type, weight, root, bias, num_relations):
    """Pure-JAX f32 reference of RGCNConv(mean) + ReLU."""
    N = x.shape[0]
    src, dst = edge_index[0], edge_index[1]
    out = x @ root + bias[None, :]
    for r in range(num_relations):
        A = jnp.zeros((N, N), jnp.float32).at[dst, src].add(
            (edge_type == r).astype(jnp.float32))
        deg = A.sum(axis=1, keepdims=True)
        A = A / jnp.maximum(deg, 1.0)
        out = out + A @ (x @ weight[r])
    return jnp.maximum(out, 0.0)


if __name__ == "__main__":
    # Small synthetic graph.
    N = 16            # nodes
    Cin = 8           # in_channels
    Cout = 16         # out_channels
    R = 3             # num_relations
    E = 40            # edges

    key = jax.random.PRNGKey(0)
    kx, ke_src, ke_dst, ke_typ, kw, kr, kb = jax.random.split(key, 7)

    x = jax.random.normal(kx, (N, Cin), dtype=jnp.float32)
    edge_index = jnp.stack([
        jax.random.randint(ke_src, (E,), 0, N, dtype=jnp.int32),
        jax.random.randint(ke_dst, (E,), 0, N, dtype=jnp.int32),
    ])
    edge_type = jax.random.randint(ke_typ, (E,), 0, R, dtype=jnp.int32)

    # Deterministic parameter init (glorot-ish weights, small uniform bias).
    w_scale = (6.0 / (Cin + Cout)) ** 0.5
    weight = jax.random.uniform(kw, (R, Cin, Cout), jnp.float32, -w_scale, w_scale)
    root = jax.random.uniform(kr, (Cin, Cout), jnp.float32, -w_scale, w_scale)
    bias = jax.random.uniform(kb, (Cout,), jnp.float32, -0.1, 0.1)

    out = rgcn_forward(x, edge_index, edge_type, weight, root, bias,
                       num_relations=R)
    out = jax.block_until_ready(out)

    ref = _reference(x, edge_index, edge_type, weight, root, bias, R)
    assert out.shape == (N, Cout)
    # bf16 operand streaming (f32 accumulation) -> compare with a bf16-level
    # tolerance against the pure-f32 reference.
    assert jnp.allclose(out, ref, atol=5e-2, rtol=5e-2), "mismatch vs reference"

    print("KERNEL_OK")
</pallas_src>

<mosaic_0001>
module attributes {stable_mosaic.version = 11 : i64} {
  func.func @_rgcn_kernel(%arg0: i32, %arg1: i32, %arg2: i32, %arg3: memref<6xi32, #tpu.memory_space<smem>>, %arg4: memref<6xi32, #tpu.memory_space<smem>>, %arg5: memref<6xi32, #tpu.memory_space<smem>>, %arg6: memref<1x256x512xbf16, #tpu.memory_space<vmem>>, %arg7: memref<512x128xbf16, #tpu.memory_space<vmem>>, %arg8: memref<1x128x128xbf16, #tpu.memory_space<vmem>>, %arg9: memref<128x128xbf16, #tpu.memory_space<vmem>>, %arg10: memref<1x128xf32, #tpu.memory_space<vmem>>, %arg11: memref<1x256x1xf32, #tpu.memory_space<vmem>>, %arg12: memref<256x128xf32, #tpu.memory_space<vmem>>, %arg13: memref<256x128xf32, #tpu.memory_space<vmem>>) attributes {dimension_semantics = [#tpu.dimension_semantics<parallel>, #tpu.dimension_semantics<arbitrary>, #tpu.dimension_semantics<arbitrary>], iteration_bounds = array<i64: 2, 3, 1>, scalar_prefetch = 3 : i64, scratch_operands = 1 : i64, tpu.core_type = #tpu.core_type<tc>, window_params = [{transform_indices = @transform_0, window_bounds = array<i64: 1, 256, 512>}, {pipeline_mode = #tpu.pipeline_mode<synchronous>, transform_indices = @transform_1, window_bounds = array<i64: 512, 128>}, {transform_indices = @transform_2, window_bounds = array<i64: 1, 128, 128>}, {pipeline_mode = #tpu.pipeline_mode<synchronous>, transform_indices = @transform_3, window_bounds = array<i64: 128, 128>}, {pipeline_mode = #tpu.pipeline_mode<synchronous>, transform_indices = @transform_4, window_bounds = array<i64: 1, 128>}, {transform_indices = @transform_5, window_bounds = array<i64: 1, 256, 1>}, {transform_indices = @transform_6, window_bounds = array<i64: 256, 128>}]} {
    %c3_i32 = arith.constant 3 : i32
    %0 = arith.muli %arg0, %c3_i32 : i32
    %1 = arith.addi %0, %arg1 : i32
    %2 = arith.index_cast %1 : i32 to index
    %3 = memref.load %arg5[%2] : memref<6xi32, #tpu.memory_space<smem>>
    %c0_i32 = arith.constant 0 : i32
    %4 = arith.cmpi eq, %arg1, %c0_i32 : i32
    %c0_i32_0 = arith.constant 0 : i32
    %5 = arith.cmpi eq, %arg2, %c0_i32_0 : i32
    %6 = arith.andi %4, %5 : i1
    %7 = arith.extui %6 : i1 to i32
    %c0_i32_1 = arith.constant 0 : i32
    %8 = arith.cmpi ne, %7, %c0_i32_1 : i32
    scf.if %8 {
      %c256_i32 = arith.constant 256 : i32
      %23 = arith.muli %arg0, %c256_i32 : i32
      %24 = tpu.assume_multiple %23, 256 : i32
      %25 = arith.index_cast %24 : i32 to index
      %c0 = arith.constant 0 : index
      %26 = vector.load %arg7[%25, %c0] : memref<512x128xbf16, #tpu.memory_space<vmem>>, vector<256x128xbf16>
      %c0_9 = arith.constant 0 : index
      %c0_10 = arith.constant 0 : index
      %27 = vector.load %arg9[%c0_9, %c0_10] : memref<128x128xbf16, #tpu.memory_space<vmem>>, vector<128x128xbf16>
      %cst = arith.constant dense<0.000000e+00> : vector<256x128xf32>
      %28 = tpu.matmul %26, %27, %cst {dimension_numbers = #tpu.dot_dimension_numbers<[1], [0], [0], [1], [0, 0, 1, 1], [], []>} : vector<256x128xbf16>, vector<128x128xbf16>, vector<256x128xf32> -> vector<256x128xf32>
      %c0_11 = arith.constant 0 : index
      %c0_12 = arith.constant 0 : index
      %29 = vector.load %arg10[%c0_11, %c0_12] : memref<1x128xf32, #tpu.memory_space<vmem>>, vector<1x128xf32>
      %30 = vector.broadcast %29 : vector<1x128xf32> to vector<256x128xf32>
      %31 = arith.addf %28, %30 : vector<256x128xf32>
      %c0_13 = arith.constant 0 : index
      %c0_14 = arith.constant 0 : index
      %32 = vector.load %arg12[%c0_13, %c0_14] : memref<256x128xf32, #tpu.memory_space<vmem>>, vector<256x128xf32>
      tpu.vector_store %arg12[%c0_13, %c0_14], %31 {strides = array<i32>} : memref<256x128xf32, #tpu.memory_space<vmem>>, vector<256x128xf32>,
    } else {
    }
    %c0_i32_2 = arith.constant 0 : i32
    %9 = arith.cmpi eq, %arg2, %c0_i32_2 : i32
    %10 = arith.extui %9 : i1 to i32
    %c0_i32_3 = arith.constant 0 : i32
    %11 = arith.cmpi ne, %10, %c0_i32_3 : i32
    scf.if %11 {
      %cst = arith.constant 0.000000e+00 : f32
      %23 = vector.broadcast %cst : f32 to vector<256x128xf32>
      %c0 = arith.constant 0 : index
      %c0_9 = arith.constant 0 : index
      %24 = vector.load %arg13[%c0, %c0_9] : memref<256x128xf32, #tpu.memory_space<vmem>>, vector<256x128xf32>
      tpu.vector_store %arg13[%c0, %c0_9], %23 {strides = array<i32>} : memref<256x128xf32, #tpu.memory_space<vmem>>, vector<256x128xf32>,
    } else {
    }
    %12 = arith.cmpi slt, %arg2, %3 : i32
    %13 = arith.extui %12 : i1 to i32
    %c0_i32_4 = arith.constant 0 : i32
    %14 = arith.cmpi ne, %13, %c0_i32_4 : i32
    scf.if %14 {
      %c1_i32 = arith.constant 1 : i32
      %23 = arith.muli %1, %c1_i32 : i32
      %24 = arith.addi %23, %arg2 : i32
      %25 = arith.index_cast %24 : i32 to index
      %26 = memref.load %arg4[%25] : memref<6xi32, #tpu.memory_space<smem>>
      %c512_i32 = arith.constant 512 : i32
      %27 = arith.muli %26, %c512_i32 : i32
      %28 = tpu.assume_multiple %27, 512 : i32
      %29 = arith.index_cast %28 : i32 to index
      %c0 = arith.constant 0 : index
      %30 = vector.load %arg7[%29, %c0] : memref<512x128xbf16, #tpu.memory_space<vmem>>, vector<512x128xbf16>
      %c0_9 = arith.constant 0 : index
      %c0_10 = arith.constant 0 : index
      %31 = vector.load %arg13[%c0_9, %c0_10] : memref<256x128xf32, #tpu.memory_space<vmem>>, vector<256x128xf32>
      %c0_11 = arith.constant 0 : index
      %c0_12 = arith.constant 0 : index
      %c0_13 = arith.constant 0 : index
      %32 = vector.load %arg6[%c0_11, %c0_12, %c0_13] : memref<1x256x512xbf16, #tpu.memory_space<vmem>>, vector<1x256x512xbf16>
      %33 = vector.shape_cast %32 : vector<1x256x512xbf16> to vector<256x512xbf16>
      %cst = arith.constant dense<0.000000e+00> : vector<256x128xf32>
      %34 = tpu.matmul %33, %30, %cst {dimension_numbers = #tpu.dot_dimension_numbers<[1], [0], [0], [1], [0, 0, 1, 1], [], []>} : vector<256x512xbf16>, vector<512x128xbf16>, vector<256x128xf32> -> vector<256x128xf32>
      %35 = arith.addf %31, %34 : vector<256x128xf32>
      %c0_14 = arith.constant 0 : index
      %c0_15 = arith.constant 0 : index
      %36 = vector.load %arg13[%c0_14, %c0_15] : memref<256x128xf32, #tpu.memory_space<vmem>>, vector<256x128xf32>
      tpu.vector_store %arg13[%c0_14, %c0_15], %35 {strides = array<i32>} : memref<256x128xf32, #tpu.memory_space<vmem>>, vector<256x128xf32>,
    } else {
    }
    %c0_i32_5 = arith.constant 0 : i32
    %15 = arith.cmpi eq, %arg2, %c0_i32_5 : i32
    %16 = arith.extui %15 : i1 to i32
    %c0_i32_6 = arith.constant 0 : i32
    %17 = arith.cmpi ne, %16, %c0_i32_6 : i32
    scf.if %17 {
      %c0 = arith.constant 0 : index
      %c0_9 = arith.constant 0 : index
      %23 = vector.load %arg13[%c0, %c0_9] : memref<256x128xf32, #tpu.memory_space<vmem>>, vector<256x128xf32>
      %c0_10 = arith.constant 0 : index
      %c0_11 = arith.constant 0 : index
      %c0_12 = arith.constant 0 : index
      %24 = vector.load %arg11[%c0_10, %c0_11, %c0_12] : memref<1x256x1xf32, #tpu.memory_space<vmem>>, vector<1x256x1xf32>
      %25 = vector.shape_cast %24 : vector<1x256x1xf32> to vector<256x1xf32>
      %26 = vector.broadcast %25 : vector<256x1xf32> to vector<256x128xf32>
      %27 = arith.mulf %23, %26 : vector<256x128xf32>
      %28 = arith.truncf %27 : vector<256x128xf32> to vector<256x128xbf16>
      %c0_13 = arith.constant 0 : index
      %c0_14 = arith.constant 0 : index
      %29 = vector.load %arg12[%c0_13, %c0_14] : memref<256x128xf32, #tpu.memory_space<vmem>>, vector<256x128xf32>
      %c0_15 = arith.constant 0 : index
      %c0_16 = arith.constant 0 : index
      %c0_17 = arith.constant 0 : index
      %30 = vector.load %arg8[%c0_15, %c0_16, %c0_17] : memref<1x128x128xbf16, #tpu.memory_space<vmem>>, vector<1x128x128xbf16>
      %31 = vector.shape_cast %30 : vector<1x128x128xbf16> to vector<128x128xbf16>
      %cst = arith.constant dense<0.000000e+00> : vector<256x128xf32>
      %32 = tpu.matmul %28, %31, %cst {dimension_numbers = #tpu.dot_dimension_numbers<[1], [0], [0], [1], [0, 0, 1, 1], [], []>} : vector<256x128xbf16>, vector<128x128xbf16>, vector<256x128xf32> -> vector<256x128xf32>
      %33 = arith.addf %29, %32 : vector<256x128xf32>
      %c0_18 = arith.constant 0 : index
      %c0_19 = arith.constant 0 : index
      %34 = vector.load %arg12[%c0_18, %c0_19] : memref<256x128xf32, #tpu.memory_space<vmem>>, vector<256x128xf32>
      tpu.vector_store %arg12[%c0_18, %c0_19], %33 {strides = array<i32>} : memref<256x128xf32, #tpu.memory_space<vmem>>, vector<256x128xf32>,
    } else {
    }
    %c2_i32 = arith.constant 2 : i32
    %18 = arith.cmpi eq, %arg1, %c2_i32 : i32
    %c0_i32_7 = arith.constant 0 : i32
    %19 = arith.cmpi eq, %arg2, %c0_i32_7 : i32
    %20 = arith.andi %18, %19 : i1
    %21 = arith.extui %20 : i1 to i32
    %c0_i32_8 = arith.constant 0 : i32
    %22 = arith.cmpi ne, %21, %c0_i32_8 : i32
    scf.if %22 {
      %c0 = arith.constant 0 : index
      %c0_9 = arith.constant 0 : index
      %23 = vector.load %arg12[%c0, %c0_9] : memref<256x128xf32, #tpu.memory_space<vmem>>, vector<256x128xf32>
      %cst = arith.constant 0.000000e+00 : f32
      %24 = vector.broadcast %cst : f32 to vector<256x128xf32>
      %25 = arith.maximumf %23, %24 : vector<256x128xf32>
      %c0_10 = arith.constant 0 : index
      %c0_11 = arith.constant 0 : index
      %26 = vector.load %arg12[%c0_10, %c0_11] : memref<256x128xf32, #tpu.memory_space<vmem>>, vector<256x128xf32>
      tpu.vector_store %arg12[%c0_10, %c0_11], %25 {strides = array<i32>} : memref<256x128xf32, #tpu.memory_space<vmem>>, vector<256x128xf32>,
    } else {
    }
    return
  }
  func.func @transform_0(%arg0: i32, %arg1: i32, %arg2: i32, %arg3: memref<6xi32, #tpu.memory_space<smem>>, %arg4: memref<6xi32, #tpu.memory_space<smem>>, %arg5: memref<6xi32, #tpu.memory_space<smem>>) -> (i32, i32, i32) {
    %c3_i32 = arith.constant 3 : i32
    %0 = arith.muli %arg0, %c3_i32 : i32
    %1 = arith.addi %0, %arg1 : i32
    %c1_i32 = arith.constant 1 : i32
    %2 = arith.muli %1, %c1_i32 : i32
    %3 = arith.addi %2, %arg2 : i32
    %4 = arith.index_cast %3 : i32 to index
    %5 = memref.load %arg3[%4] : memref<6xi32, #tpu.memory_space<smem>>
    %c0_i32 = arith.constant 0 : i32
    %c0_i32_0 = arith.constant 0 : i32
    %c0_i32_1 = arith.constant 0 : i32
    return %5, %c0_i32, %c0_i32_0 : i32, i32, i32
  }
  func.func @transform_1(%arg0: i32, %arg1: i32, %arg2: i32, %arg3: memref<6xi32, #tpu.memory_space<smem>>, %arg4: memref<6xi32, #tpu.memory_space<smem>>, %arg5: memref<6xi32, #tpu.memory_space<smem>>) -> (i32, i32) {
    %c0_i32 = arith.constant 0 : i32
    %c0_i32_0 = arith.constant 0 : i32
    %c0_i32_1 = arith.constant 0 : i32
    return %c0_i32, %c0_i32_0 : i32, i32
  }
  func.func @transform_2(%arg0: i32, %arg1: i32, %arg2: i32, %arg3: memref<6xi32, #tpu.memory_space<smem>>, %arg4: memref<6xi32, #tpu.memory_space<smem>>, %arg5: memref<6xi32, #tpu.memory_space<smem>>) -> (i32, i32, i32) {
    %c0_i32 = arith.constant 0 : i32
    %c0_i32_0 = arith.constant 0 : i32
    %c0_i32_1 = arith.constant 0 : i32
    return %arg1, %c0_i32, %c0_i32_0 : i32, i32, i32
  }
  func.func @transform_3(%arg0: i32, %arg1: i32, %arg2: i32, %arg3: memref<6xi32, #tpu.memory_space<smem>>, %arg4: memref<6xi32, #tpu.memory_space<smem>>, %arg5: memref<6xi32, #tpu.memory_space<smem>>) -> (i32, i32) {
    %c0_i32 = arith.constant 0 : i32
    %c0_i32_0 = arith.constant 0 : i32
    %c0_i32_1 = arith.constant 0 : i32
    return %c0_i32, %c0_i32_0 : i32, i32
  }
  func.func @transform_4(%arg0: i32, %arg1: i32, %arg2: i32, %arg3: memref<6xi32, #tpu.memory_space<smem>>, %arg4: memref<6xi32, #tpu.memory_space<smem>>, %arg5: memref<6xi32, #tpu.memory_space<smem>>) -> (i32, i32) {
    %c0_i32 = arith.constant 0 : i32
    %c0_i32_0 = arith.constant 0 : i32
    %c0_i32_1 = arith.constant 0 : i32
    return %c0_i32, %c0_i32_0 : i32, i32
  }
  func.func @transform_5(%arg0: i32, %arg1: i32, %arg2: i32, %arg3: memref<6xi32, #tpu.memory_space<smem>>, %arg4: memref<6xi32, #tpu.memory_space<smem>>, %arg5: memref<6xi32, #tpu.memory_space<smem>>) -> (i32, i32, i32) {
    %c0_i32 = arith.constant 0 : i32
    %c0_i32_0 = arith.constant 0 : i32
    return %arg1, %arg0, %c0_i32 : i32, i32, i32
  }
  func.func @transform_6(%arg0: i32, %arg1: i32, %arg2: i32, %arg3: memref<6xi32, #tpu.memory_space<smem>>, %arg4: memref<6xi32, #tpu.memory_space<smem>>, %arg5: memref<6xi32, #tpu.memory_space<smem>>) -> (i32, i32) {
    %c0_i32 = arith.constant 0 : i32
    %c0_i32_0 = arith.constant 0 : i32
    return %arg0, %c0_i32 : i32, i32
  }
}

</mosaic_0001>

<llo_original>
// kernel: _rgcn_pallas.1
$region0: #{_rgcn_pallas.1}
  #allocation0 [shape = 'u32[]', space=smem, size = 0x4, offset = 0x4, fixed_abs, tag = 'smem constant byte address 0x4 - core index']
  #allocation1 [shape = 'u32[72,128]{1,0:T(1,128)}', space=vmem, size = 0x9000, scoped, tag = 'internal scratch']
  #allocation2 [shape = 'f32[256,128]{1,0:T(8,128)}', space=vmem, size = 0x20000, scoped, tag = 'scratch operand']
  #allocation3 [shape = 's32[1]{0}', space=sflag, size = 0x4, scoped, tag = 'scoped memory for _rgcn_pallas.1']
  #allocation4 [shape = 'u8[512]{0}', space=smem, size = 0x200, scoped, tag = 'prefetched SMEM operand 0']
  #allocation5 [shape = 'u8[512]{0}', space=smem, size = 0x200, scoped, tag = 'prefetched SMEM operand 1']
  #allocation6 [shape = 'u8[512]{0}', space=smem, size = 0x200, scoped, tag = 'prefetched SMEM operand 2']
  %s0 = inlined_call_operand.vmem [shape: s32[6], index: 0, kind: input, shape index: {}]
  %s1 = inlined_call_operand.vmem [shape: s32[6], index: 1, kind: input, shape index: {}]
  %s2 = inlined_call_operand.vmem [shape: s32[6], index: 2, kind: input, shape index: {}]
  %s3 = inlined_call_operand.vmem [shape: bf16[3,256,512], index: 3, kind: input, shape index: {}]
  %s4 = inlined_call_operand.vmem [shape: bf16[512,128], index: 4, kind: input, shape index: {}]
  %s5 = inlined_call_operand.vmem [shape: bf16[3,128,128], index: 5, kind: input, shape index: {}]
  %s6 = inlined_call_operand.vmem [shape: bf16[128,128], index: 6, kind: input, shape index: {}]
  %s7 = inlined_call_operand.vmem [shape: f32[1,128], index: 7, kind: input, shape index: {}]
  %s8 = inlined_call_operand.vmem [shape: f32[3,512,1], index: 8, kind: input, shape index: {}]
  %s9 = inlined_call_operand.vmem [shape: f32[512,128], index: 9, kind: output, shape index: {}]
  %s10 = sld [smem:[#allocation0]]
  $region77: #{_rgcn_pallas.1} parent=0
    _
  %s12 = ssub.s32 1, %s10
  %s13 = scalar_select 0, %s12, %s10
  %s15 = sshll.u32 %s0, 4
  %s16 = int_to_ptr.vmem [resolvable:$true] %s15
  %18 = dma.vmem_to_smem %s16, 16, [#allocation4], [#allocation3]
  %s20 = sshll.u32 %s1, 4
  %s21 = int_to_ptr.vmem [resolvable:$true] %s20
  %23 = dma.vmem_to_smem %s21, 16, [#allocation5], [#allocation3]
  %s25 = sshll.u32 %s2, 4
  %s26 = int_to_ptr.vmem [resolvable:$true] %s25
  %28 = dma.vmem_to_smem %s26, 16, [#allocation6], [#allocation3]
  %30 = dma.done [#allocation3], 48
  %31 = sfence
  loop: start=0, step=1, limit=8
  $region2: #{_rgcn_pallas.1} parent=0 // loop_pre_header
    _
  $region3: #{_rgcn_pallas.1} parent=0 // loop_header
    %s33 = sphi 0, %s37
    %p34 = scmp.ge.s32.totalorder %s33, 8
    %s40 = sphi 0, %s59
    %s41 = sphi 0, %s55
    %s42 = sphi 0, %s51
    %s43 = sphi 0, %s40
    %s44 = sphi 0, %s41
    %s45 = sphi 0, %s42
    %s46 = sphi 0, %s43
    %s47 = sphi 0, %s44
    %s48 = sphi 0, %s45
    %s70 = sphi 0, %s72
    %s73 = sphi 0, %s70
    %s74 = sphi 0, %s73
    %s90 = sphi 0, %s74
    %s94 = sphi 0, %s94
    %s96 = sphi 0, %s94
    %s97 = sphi 0, %s96
    %s111 = sphi 0, %s97
    %s117 = sphi 0, %s119
    %s120 = sphi 0, %s117
    %s121 = sphi 0, %s120
    %s137 = sphi 0, %s121
    %s141 = sphi 0, %s141
    %s143 = sphi 0, %s141
    %s144 = sphi 0, %s143
    %s158 = sphi 0, %s144
    %s162 = sphi 0, %s162
    %s164 = sphi 0, %s162
    %s165 = sphi 0, %s164
    %s179 = sphi 0, %s165
    %s187 = sphi 0, %s189
    %s190 = sphi 0, %s187
    %s191 = sphi 0, %s190
    %s207 = sphi 0, %s191
    %s213 = sphi 0, %s215
    %s216 = sphi 0, %s213
    %s217 = sphi 0, %s216
    %s233 = sphi 0, %s217
  $region4: #{_rgcn_pallas.1} parent=0 // loop_header_branch
    %36 = sbr.rel (%p34) target = $region8
  $region5: #{_rgcn_pallas.1} parent=0 // loop_body
    %s38 = ssub.s32 %s33, 1
    %s39 = ssub.s32 %s33, 2
    %s49 = sadd.s32 1, %s42
    %p50 = scmp.ge.s32.totalorder %s49, 1
    %s51 = scalar_select %p50, 0, %s49
    %s52 = sadd.s32 1, %s41
    %s53 = scalar_select %p50, %s52, %s41
    %p54 = scmp.ge.s32.totalorder %s53, 3
    %s55 = scalar_select %p54, 0, %s53
    %s56 = sadd.s32 1, %s40
    %s57 = scalar_select %p54, %s56, %s40
    %p58 = scmp.ge.s32.totalorder %s57, 2
    %s59 = scalar_select %p58, 0, %s57
    %s60 = smul.u32 %s40, 3
    %s61 = sadd.s32 %s60, %s41
    %s62 = sadd.s32 %s61, %s42
    %s63 = sld [smem:[#allocation4 + %s62]]
    %s64 = smul.u32 %s59, 3
    %s65 = sadd.s32 %s64, %s55
    %s66 = sadd.s32 %s65, %s51
    %s67 = sld [smem:[#allocation4 + %s66]]
    %s68 = ssub.s32 %s63, %s67
    %p69 = scmp.eq.s32.totalorder %s68, 0
    %s71 = sadd.s32 %s70, 1
    %s72 = scalar_select %p69, %s70, %s71
    %p75 = pneg %p69
    %p76 = scmp.eq.s32.totalorder %s33, 5
    %p77 = por %p75, %p76
    %p78 = scmp.ne.s32.totalorder %s70, %s73
    %p79 = scmp.eq.s32.totalorder %s33, 0
    %p80 = por %p78, %p79
    %p81 = scmp.ne.s32.totalorder %s70, %s73
    %p82 = scmp.eq.s32.totalorder %s38, 5
    %p83 = por %p81, %p82
    %p84 = scmp.ne.s32.totalorder %s73, %s74
    %p85 = scmp.eq.s32.totalorder %s38, 0
    %p86 = por %p84, %p85
    %p87 = scmp.ne.s32.totalorder %s73, %s74
    %p88 = scmp.eq.s32.totalorder %s39, 5
    %p89 = por %p87, %p88
    %p91 = scmp.ne.s32.totalorder %s74, %s90
    %p92 = scmp.eq.s32.totalorder %s39, 0
    %p93 = por %p91, %p92
    %s95 = sadd.s32 %s94, 1
    %p98 = scmp.eq.s32.totalorder %s33, 5
    %p99 = scmp.ne.s32.totalorder %s94, %s96
    %p100 = scmp.eq.s32.totalorder %s33, 0
    %p101 = por %p99, %p100
    %p102 = scmp.ne.s32.totalorder %s94, %s96
    %p103 = scmp.eq.s32.totalorder %s38, 5
    %p104 = por %p102, %p103
    %p105 = scmp.ne.s32.totalorder %s96, %s97
    %p106 = scmp.eq.s32.totalorder %s38, 0
    %p107 = por %p105, %p106
    %p108 = scmp.ne.s32.totalorder %s96, %s97
    %p109 = scmp.eq.s32.totalorder %s39, 5
    %p110 = por %p108, %p109
    %p112 = scmp.ne.s32.totalorder %s97, %s111
    %p113 = scmp.eq.s32.totalorder %s39, 0
    %p114 = por %p112, %p113
    %s115 = ssub.s32 %s41, %s55
    %p116 = scmp.eq.s32.totalorder %s115, 0
    %s118 = sadd.s32 %s117, 1
    %s119 = scalar_select %p116, %s117, %s118
    %p122 = pneg %p116
    %p123 = scmp.eq.s32.totalorder %s33, 5
    %p124 = por %p122, %p123
    %p125 = scmp.ne.s32.totalorder %s117, %s120
    %p126 = scmp.eq.s32.totalorder %s33, 0
    %p127 = por %p125, %p126
    %p128 = scmp.ne.s32.totalorder %s117, %s120
    %p129 = scmp.eq.s32.totalorder %s38, 5
    %p130 = por %p128, %p129
    %p131 = scmp.ne.s32.totalorder %s120, %s121
    %p132 = scmp.eq.s32.totalorder %s38, 0
    %p133 = por %p131, %p132
    %p134 = scmp.ne.s32.totalorder %s120, %s121
    %p135 = scmp.eq.s32.totalorder %s39, 5
    %p136 = por %p134, %p135
    %p138 = scmp.ne.s32.totalorder %s121, %s137
    %p139 = scmp.eq.s32.totalorder %s39, 0
    %p140 = por %p138, %p139
    %s142 = sadd.s32 %s141, 1
    %p145 = scmp.eq.s32.totalorder %s33, 5
    %p146 = scmp.ne.s32.totalorder %s141, %s143
    %p147 = scmp.eq.s32.totalorder %s33, 0
    %p148 = por %p146, %p147
    %p149 = scmp.ne.s32.totalorder %s141, %s143
    %p150 = scmp.eq.s32.totalorder %s38, 5
    %p151 = por %p149, %p150
    %p152 = scmp.ne.s32.totalorder %s143, %s144
    %p153 = scmp.eq.s32.totalorder %s38, 0
    %p154 = por %p152, %p153
    %p155 = scmp.ne.s32.totalorder %s143, %s144
    %p156 = scmp.eq.s32.totalorder %s39, 5
    %p157 = por %p155, %p156
    %p159 = scmp.ne.s32.totalorder %s144, %s158
    %p160 = scmp.eq.s32.totalorder %s39, 0
    %p161 = por %p159, %p160
    %s163 = sadd.s32 %s162, 1
    %p166 = scmp.eq.s32.totalorder %s33, 5
    %p167 = scmp.ne.s32.totalorder %s162, %s164
    %p168 = scmp.eq.s32.totalorder %s33, 0
    %p169 = por %p167, %p168
    %p170 = scmp.ne.s32.totalorder %s162, %s164
    %p171 = scmp.eq.s32.totalorder %s38, 5
    %p172 = por %p170, %p171
    %p173 = scmp.ne.s32.totalorder %s164, %s165
    %p174 = scmp.eq.s32.totalorder %s38, 0
    %p175 = por %p173, %p174
    %p176 = scmp.ne.s32.totalorder %s164, %s165
    %p177 = scmp.eq.s32.totalorder %s39, 5
    %p178 = por %p176, %p177
    %p180 = scmp.ne.s32.totalorder %s165, %s179
    %p181 = scmp.eq.s32.totalorder %s39, 0
    %p182 = por %p180, %p181
    %s183 = ssub.s32 %s41, %s55
    %s184 = ssub.s32 %s40, %s59
    %s185 = sor.u32 %s183, %s184
    %p186 = scmp.eq.s32.totalorder %s185, 0
    %s188 = sadd.s32 %s187, 1
    %s189 = scalar_select %p186, %s187, %s188
    %p192 = pneg %p186
    %p193 = scmp.eq.s32.totalorder %s33, 5
    %p194 = por %p192, %p193
    %p195 = scmp.ne.s32.totalorder %s187, %s190
    %p196 = scmp.eq.s32.totalorder %s33, 0
    %p197 = por %p195, %p196
    %p198 = scmp.ne.s32.totalorder %s187, %s190
    %p199 = scmp.eq.s32.totalorder %s38, 5
    %p200 = por %p198, %p199
    %p201 = scmp.ne.s32.totalorder %s190, %s191
    %p202 = scmp.eq.s32.totalorder %s38, 0
    %p203 = por %p201, %p202
    %p204 = scmp.ne.s32.totalorder %s190, %s191
    %p205 = scmp.eq.s32.totalorder %s39, 5
    %p206 = por %p204, %p205
    %p208 = scmp.ne.s32.totalorder %s191, %s207
    %p209 = scmp.eq.s32.totalorder %s39, 0
    %p210 = por %p208, %p209
    %s211 = ssub.s32 %s40, %s59
    %p212 = scmp.eq.s32.totalorder %s211, 0
    %s214 = sadd.s32 %s213, 1
    %s215 = scalar_select %p212, %s213, %s214
    %p218 = pneg %p212
    %p219 = scmp.eq.s32.totalorder %s33, 5
    %p220 = por %p218, %p219
    %p221 = scmp.ne.s32.totalorder %s213, %s216
    %p222 = scmp.eq.s32.totalorder %s33, 0
    %p223 = por %p221, %p222
    %p224 = scmp.ne.s32.totalorder %s213, %s216
    %p225 = scmp.eq.s32.totalorder %s38, 5
    %p226 = por %p224, %p225
    %p227 = scmp.ne.s32.totalorder %s216, %s217
    %p228 = scmp.eq.s32.totalorder %s38, 0
    %p229 = por %p227, %p228
    %p230 = scmp.ne.s32.totalorder %s216, %s217
    %p231 = scmp.eq.s32.totalorder %s39, 5
    %p232 = por %p230, %p231
    %p234 = scmp.ne.s32.totalorder %s217, %s233
    %p235 = scmp.eq.s32.totalorder %s39, 0
    %p236 = por %p234, %p235
    %p237 = scmp.le.s32.totalorder 1, %s33
    %p238 = scmp.lt.s32.totalorder %s33, 7
    %p239 = pnand %p237, %p238
    %p240 = pneg %p239
    // Predicated region
    $region9: #{_rgcn_pallas.1} parent=5 // pred_check
      _
    $region10: #{_rgcn_pallas.1} parent=5 // pred_check_branch
      %242 = sbr.rel (%p239) target = $region12
    $region11: #{_rgcn_pallas.1} parent=5 // pred_region
      %s243 = ssub.s32 %s33, 1
      // Predicated region
      $region13: #{_rgcn_pallas.1} parent=11 // pred_check
        %p244 = pneg %p107
      $region14: #{_rgcn_pallas.1} parent=11 // pred_check_branch
        %246 = sbr.rel (%p244) target = $region16
      $region15: #{_rgcn_pallas.1} parent=11 // pred_region
        _
      $region16: #{_rgcn_pallas.1} parent=11 // pred_fallthru
        _
      // Predicated region
      $region17: #{_rgcn_pallas.1} parent=11 // pred_check
        %p247 = pneg %p154
      $region18: #{_rgcn_pallas.1} parent=11 // pred_check_branch
        %249 = sbr.rel (%p247) target = $region20
      $region19: #{_rgcn_pallas.1} parent=11 // pred_region
        _
      $region20: #{_rgcn_pallas.1} parent=11 // pred_fallthru
        _
      // Predicated region
      $region21: #{_rgcn_pallas.1} parent=11 // pred_check
        %p250 = pneg %p175
      $region22: #{_rgcn_pallas.1} parent=11 // pred_check_branch
        %252 = sbr.rel (%p250) target = $region24
      $region23: #{_rgcn_pallas.1} parent=11 // pred_region
        _
      $region24: #{_rgcn_pallas.1} parent=11 // pred_fallthru
        _
    $region12: #{_rgcn_pallas.1} parent=5 // pred_fallthru
      _
    %p253 = scmp.lt.s32.totalorder %s33, 6
    // Predicated region
    $region25: #{_rgcn_pallas.1} parent=5 // pred_check
      %p254 = pneg %p253
    $region26: #{_rgcn_pallas.1} parent=5 // pred_check_branch
      %256 = sbr.rel (%p254) target = $region28
    $region27: #{_rgcn_pallas.1} parent=5 // pred_region
      // Predicated region
      $region29: #{_rgcn_pallas.1} parent=27 // pred_check
        %p257 = pneg %p80
      $region30: #{_rgcn_pallas.1} parent=27 // pred_check_branch
        %259 = sbr.rel (%p257) target = $region32
      $region31: #{_rgcn_pallas.1} parent=27 // pred_region
        %s260 = smul.u32 %s40, 3
        %s261 = sadd.s32 %s260, %s41
        %s262 = sadd.s32 %s261, %s42
        %s263 = sld [smem:[#allocation4 + %s262]]
        %p264 = scmp.lt.s32.totalorder %s263, 2
        %s265 = scalar_select %p264, %s263, 2
        %s266 = smul.addr %s265, 128
        %s267 = smul.addr %s266, 4
        %s268 = scalar_lea.vmem %s3, %s267
        %s269 = smul.u32 %s40, 3
        %s270 = sadd.s32 %s269, %s41
        %s271 = sadd.s32 %s270, %s42
        %s272 = sld [smem:[#allocation4 + %s271]]
      $region32: #{_rgcn_pallas.1} parent=27 // pred_fallthru
        _
      // Predicated region
      $region33: #{_rgcn_pallas.1} parent=27 // pred_check
        %p273 = pneg %p127
      $region34: #{_rgcn_pallas.1} parent=27 // pred_check_branch
        %275 = sbr.rel (%p273) target = $region36
      $region35: #{_rgcn_pallas.1} parent=27 // pred_region
        %p276 = scmp.lt.s32.totalorder %s41, 2
        %s277 = scalar_select %p276, %s41, 2
        %s278 = smul.addr %s277, 16
        %s279 = smul.addr %s278, 4
        %s280 = scalar_lea.vmem %s5, %s279
      $region36: #{_rgcn_pallas.1} parent=27 // pred_fallthru
        _
      // Predicated region
      $region37: #{_rgcn_pallas.1} parent=27 // pred_check
        %p281 = pneg %p197
      $region38: #{_rgcn_pallas.1} parent=27 // pred_check_branch
        %283 = sbr.rel (%p281) target = $region40
      $region39: #{_rgcn_pallas.1} parent=27 // pred_region
        %s284 = smul.u32 32, %s40
        %p285 = scmp.lt.s32.totalorder %s41, 2
        %s286 = scalar_select %p285, %s41, 2
        %p287 = scmp.lt.s32.totalorder %s284, 63
        %s288 = scalar_select %p287, %s284, 63
        %s289 = smul.addr %s286, 64
        %s290 = sadd.s32 %s288, %s289
        %s291 = smul.addr %s290, 8
        %s292 = scalar_lea.vmem %s8, %s291
        %s293 = smul.u32 32, %s40
      $region40: #{_rgcn_pallas.1} parent=27 // pred_fallthru
        _
    $region28: #{_rgcn_pallas.1} parent=5 // pred_fallthru
      _
    %p294 = scmp.le.s32.totalorder 1, %s33
    %p295 = scmp.lt.s32.totalorder %s33, 7
    %p296 = pnand %p294, %p295
    %p297 = pneg %p296
    // Predicated region
    $region41: #{_rgcn_pallas.1} parent=5 // pred_check
      _
    $region42: #{_rgcn_pallas.1} parent=5 // pred_check_branch
      %299 = sbr.rel (%p296) target = $region44
    $region43: #{_rgcn_pallas.1} parent=5 // pred_region
      %s300 = ssub.s32 %s33, 1
      %s301 = smul.u32 %s43, 3
      %s302 = sadd.s32 %s301, %s44
      %s303 = sadd.s32 %s302, %s45
      %s304 = sld [smem:[#allocation4 + %s303]]
      %p305 = scmp.lt.s32.totalorder %s304, 2
      %s306 = scalar_select %p305, %s304, 2
      %s307 = smul.addr %s306, 128
      %s308 = smul.addr %s307, 4
      %s309 = scalar_lea.vmem %s3, %s308
      %p310 = pneg %p86
      %p311 = pneg %p83
      %p312 = pneg %p107
      %p313 = pneg %p104
      %p314 = scmp.lt.s32.totalorder %s44, 2
      %s315 = scalar_select %p314, %s44, 2
      %s316 = smul.addr %s315, 16
      %s317 = smul.addr %s316, 4
      %s318 = scalar_lea.vmem %s5, %s317
      %p319 = pneg %p133
      %p320 = pneg %p130
      %p321 = pneg %p154
      %p322 = pneg %p151
      %p323 = pneg %p175
      %p324 = pneg %p172
      %s325 = smul.u32 32, %s43
      %p326 = scmp.lt.s32.totalorder %s44, 2
      %s327 = scalar_select %p326, %s44, 2
      %p328 = scmp.lt.s32.totalorder %s325, 63
      %s329 = scalar_select %p328, %s325, 63
      %s330 = smul.addr %s327, 64
      %s331 = sadd.s32 %s329, %s330
      %s332 = smul.addr %s331, 8
      %s333 = scalar_lea.vmem %s8, %s332
      %p334 = pneg %p203
      %p335 = pneg %p200
      %p336 = pneg %p229
      %p337 = pneg %p226
      %s338 = smul.u32 32, %s43
      %p339 = scmp.lt.s32.totalorder %s338, 63
      %s340 = scalar_select %p339, %s338, 63
      %s341 = smul.addr %s340, 8
      %s342 = scalar_lea.vmem %s9, %s341
      %s343 = smul.u32 %s43, 3
      %s344 = sadd.s32 %s343, %s44
      %s345 = sadd.s32 %s344, %s45
      %s346 = sld [smem:[#allocation4 + %s345]]
      %p347 = scmp.lt.s32.totalorder %s346, 2
      %s348 = scalar_select %p347, %s346, 2
      %s349 = smul.addr %s348, 128
      %s350 = smul.addr %s349, 4
      %s351 = scalar_lea.vmem %s3, %s350
      %s352 = smul.u32 %s43, 3
      %s353 = sadd.s32 %s352, %s44
      %s354 = sadd.s32 %s353, %s45
      %s355 = sld [smem:[#allocation4 + %s354]]
      %p356 = scmp.lt.s32.totalorder %s44, 2
      %s357 = scalar_select %p356, %s44, 2
      %s358 = smul.addr %s357, 16
      %s359 = smul.addr %s358, 4
      %s360 = scalar_lea.vmem %s5, %s359
      %s361 = smul.u32 32, %s43
      %p362 = scmp.lt.s32.totalorder %s44, 2
      %s363 = scalar_select %p362, %s44, 2
      %p364 = scmp.lt.s32.totalorder %s361, 63
      %s365 = scalar_select %p364, %s361, 63
      %s366 = smul.addr %s363, 64
      %s367 = sadd.s32 %s365, %s366
      %s368 = smul.addr %s367, 8
      %s369 = scalar_lea.vmem %s8, %s368
      %s370 = smul.u32 32, %s43
      %s371 = smul.u32 32, %s43
      %p372 = scmp.lt.s32.totalorder %s371, 63
      %s373 = scalar_select %p372, %s371, 63
      %s374 = smul.addr %s373, 8
      %s375 = scalar_lea.vmem %s9, %s374
      %s376 = smul.u32 32, %s43
      %s377 = smul.u32 %s43, 3
      %s378 = sadd.s32 %s377, %s44
      %s379 = sld [smem:[#allocation6 + %s378]]
      %p380 = scmp.eq.s32.totalorder %s44, 0
      %p381 = scmp.eq.s32.totalorder %s45, 0
      %p382 = pnand %p380, %p381
      %p383 = pneg %p382
      // Predicated region
      $region45: #{_rgcn_pallas.1} parent=43 // pred_check
        _
      $region46: #{_rgcn_pallas.1} parent=43 // pred_check_branch
        %385 = sbr.rel (%p382) target = $region48
      $region47: #{_rgcn_pallas.1} parent=43 // pred_region
        %s386 = smul.u32 %s43, 256
        %s387 = sshra.s32 %s386, 3
        %s388 = sand.u32 %s386, 7
        %s389 = smul.addr %s387, 4
        %s390 = scalar_lea.vmem %s4, %s389
        %v391 = vld [vmem:[%s390] sm:$0xf]
        %v392 = vld [vmem:[%s390 + $0x4] sm:$0xf]
        %v393 = vld [vmem:[%s390 + $0x8] sm:$0xf]
        %v394 = vld [vmem:[%s390 + $0xc] sm:$0xf]
        %v395 = vld [vmem:[%s390 + $0x10] sm:$0xf]
        %v396 = vld [vmem:[%s390 + $0x14] sm:$0xf]
        %v397 = vld [vmem:[%s390 + $0x18] sm:$0xf]
        %v398 = vld [vmem:[%s390 + $0x1c] sm:$0xf]
        %v399 = vld [vmem:[%s390 + $0x20] sm:$0xf]
        %v400 = vld [vmem:[%s390 + $0x24] sm:$0xf]
        %v401 = vld [vmem:[%s390 + $0x28] sm:$0xf]
        %v402 = vld [vmem:[%s390 + $0x2c] sm:$0xf]
        %v403 = vld [vmem:[%s390 + $0x30] sm:$0xf]
        %v404 = vld [vmem:[%s390 + $0x34] sm:$0xf]
        %v405 = vld [vmem:[%s390 + $0x38] sm:$0xf]
        %v406 = vld [vmem:[%s390 + $0x3c] sm:$0xf]
        %v407 = vld [vmem:[%s390 + $0x40] sm:$0xf]
        %v408 = vld [vmem:[%s390 + $0x44] sm:$0xf]
        %v409 = vld [vmem:[%s390 + $0x48] sm:$0xf]
        %v410 = vld [vmem:[%s390 + $0x4c] sm:$0xf]
        %v411 = vld [vmem:[%s390 + $0x50] sm:$0xf]
        %v412 = vld [vmem:[%s390 + $0x54] sm:$0xf]
        %v413 = vld [vmem:[%s390 + $0x58] sm:$0xf]
        %v414 = vld [vmem:[%s390 + $0x5c] sm:$0xf]
        %v415 = vld [vmem:[%s390 + $0x60] sm:$0xf]
        %v416 = vld [vmem:[%s390 + $0x64] sm:$0xf]
        %v417 = vld [vmem:[%s390 + $0x68] sm:$0xf]
        %v418 = vld [vmem:[%s390 + $0x6c] sm:$0xf]
        %v419 = vld [vmem:[%s390 + $0x70] sm:$0xf]
        %v420 = vld [vmem:[%s390 + $0x74] sm:$0xf]
        %v421 = vld [vmem:[%s390 + $0x78] sm:$0xf]
        %v422 = vld [vmem:[%s390 + $0x7c] sm:$0xf]
        %v423 = vld [vmem:[%s6] sm:$0xf]
        %v424 = vld [vmem:[%s6 + $0x4] sm:$0xf]
        %v425 = vld [vmem:[%s6 + $0x8] sm:$0xf]
        %v426 = vld [vmem:[%s6 + $0xc] sm:$0xf]
        %v427 = vld [vmem:[%s6 + $0x10] sm:$0xf]
        %v428 = vld [vmem:[%s6 + $0x14] sm:$0xf]
        %v429 = vld [vmem:[%s6 + $0x18] sm:$0xf]
        %v430 = vld [vmem:[%s6 + $0x1c] sm:$0xf]
        %v431 = vld [vmem:[%s6 + $0x20] sm:$0xf]
        %v432 = vld [vmem:[%s6 + $0x24] sm:$0xf]
        %v433 = vld [vmem:[%s6 + $0x28] sm:$0xf]
        %v434 = vld [vmem:[%s6 + $0x2c] sm:$0xf]
        %v435 = vld [vmem:[%s6 + $0x30] sm:$0xf]
        %v436 = vld [vmem:[%s6 + $0x34] sm:$0xf]
        %v437 = vld [vmem:[%s6 + $0x38] sm:$0xf]
        %v438 = vld [vmem:[%s6 + $0x3c] sm:$0xf]
        %v439 = vld [vmem:[%s7] sm:$0x1]
        %v441 = vperm.slane %v439, 0
        %v475 = vunpack.c.l.b16 %v391
        %v476 = vunpack.c.l.b16 %v392
        %v477 = vunpack.c.l.b16 %v393
        %v478 = vunpack.c.l.b16 %v394
        %v479 = vunpack.c.l.b16 %v395
        %v480 = vunpack.c.l.b16 %v396
        %v481 = vunpack.c.l.b16 %v397
        %v482 = vunpack.c.l.b16 %v398
        %v483 = vunpack.c.l.b16 %v399
        %v484 = vunpack.c.l.b16 %v400
        %v485 = vunpack.c.l.b16 %v401
        %v486 = vunpack.c.l.b16 %v402
        %v487 = vunpack.c.l.b16 %v403
        %v488 = vunpack.c.l.b16 %v404
        %v489 = vunpack.c.l.b16 %v405
        %v490 = vunpack.c.l.b16 %v406
        %v491 = vunpack.c.l.b16 %v407
        %v492 = vunpack.c.l.b16 %v408
        %v493 = vunpack.c.l.b16 %v409
        %v494 = vunpack.c.l.b16 %v410
        %v495 = vunpack.c.l.b16 %v411
        %v496 = vunpack.c.l.b16 %v412
        %v497 = vunpack.c.l.b16 %v413
        %v498 = vunpack.c.l.b16 %v414
        %v499 = vunpack.c.l.b16 %v415
        %v500 = vunpack.c.l.b16 %v416
        %v501 = vunpack.c.l.b16 %v417
        %v502 = vunpack.c.l.b16 %v418
        %v503 = vunpack.c.l.b16 %v419
        %v504 = vunpack.c.l.b16 %v420
        %v505 = vunpack.c.l.b16 %v421
        %v506 = vunpack.c.l.b16 %v422
        %v507 = vpack.c.b16 %v476, %v475
        %v508 = vpack.c.b16 %v478, %v477
        %v509 = vpack.c.b16 %v480, %v479
        %v510 = vpack.c.b16 %v482, %v481
        %v511 = vpack.c.b16 %v484, %v483
        %v512 = vpack.c.b16 %v486, %v485
        %v513 = vpack.c.b16 %v488, %v487
        %v514 = vpack.c.b16 %v490, %v489
        %v515 = vpack.c.b16 %v492, %v491
        %v516 = vpack.c.b16 %v494, %v493
        %v517 = vpack.c.b16 %v496, %v495
        %v518 = vpack.c.b16 %v498, %v497
        %v519 = vpack.c.b16 %v500, %v499
        %v520 = vpack.c.b16 %v502, %v501
        %v521 = vpack.c.b16 %v504, %v503
        %v522 = vpack.c.b16 %v506, %v505
        %v555 = vunpack.c.l.b16 %v423
        %v556 = vunpack.c.l.b16 %v424
        %v557 = vunpack.c.l.b16 %v425
        %v558 = vunpack.c.l.b16 %v426
        %v559 = vunpack.c.l.b16 %v427
        %v560 = vunpack.c.l.b16 %v428
        %v561 = vunpack.c.l.b16 %v429
        %v562 = vunpack.c.l.b16 %v430
        %v563 = vunpack.c.l.b16 %v431
        %v564 = vunpack.c.l.b16 %v432
        %v565 = vunpack.c.l.b16 %v433
        %v566 = vunpack.c.l.b16 %v434
        %v567 = vunpack.c.l.b16 %v435
        %v568 = vunpack.c.l.b16 %v436
        %v569 = vunpack.c.l.b16 %v437
        %v570 = vunpack.c.l.b16 %v438
        %v571 = vpack.c.b16 %v556, %v555
        %v572 = vpack.c.b16 %v558, %v557
        %v573 = vpack.c.b16 %v560, %v559
        %v574 = vpack.c.b16 %v562, %v561
        %v575 = vpack.c.b16 %v564, %v563
        %v576 = vpack.c.b16 %v566, %v565
        %v577 = vpack.c.b16 %v568, %v567
        %v578 = vpack.c.b16 %v570, %v569
        %587 = vmatpush.bf16.msra.mxu0 %v578
        %588 = vmatpush.bf16.msra.mxu0 %v577
        %589 = vmatpush.bf16.msra.mxu0 %v576
        %590 = vmatpush.bf16.msra.mxu0 %v575
        %591 = vmatpush.bf16.msra.mxu0 %v574
        %592 = vmatpush.bf16.msra.mxu0 %v573
        %593 = vmatpush.bf16.msra.mxu0 %v572
        %594 = vmatpush.bf16.msra.mxu0 %v571
        %595 = vmatmul.bf16.gmra.mxu0 %v507
        %v596 = vpop.f32.mrf.mxu0
        %v597 = vadd.f32 %v441, %v596
        %v598 = vpop.f32.mrf.mxu0
        %v599 = vadd.f32 %v441, %v598
        %600 = vmatmul.bf16.gmra.mxu0 %v508
        %v601 = vpop.f32.mrf.mxu0
        %v602 = vadd.f32 %v441, %v601
        %v603 = vpop.f32.mrf.mxu0
        %v604 = vadd.f32 %v441, %v603
        %605 = vmatmul.bf16.gmra.mxu0 %v509
        %v606 = vpop.f32.mrf.mxu0
        %v607 = vadd.f32 %v441, %v606
        %v608 = vpop.f32.mrf.mxu0
        %v609 = vadd.f32 %v441, %v608
        %610 = vmatmul.bf16.gmra.mxu0 %v510
        %v611 = vpop.f32.mrf.mxu0
        %v612 = vadd.f32 %v441, %v611
        %v613 = vpop.f32.mrf.mxu0
        %v614 = vadd.f32 %v441, %v613
        %615 = vmatmul.bf16.gmra.mxu0 %v511
        %v616 = vpop.f32.mrf.mxu0
        %v617 = vadd.f32 %v441, %v616
        %v618 = vpop.f32.mrf.mxu0
        %v619 = vadd.f32 %v441, %v618
        %620 = vmatmul.bf16.gmra.mxu0 %v512
        %v621 = vpop.f32.mrf.mxu0
        %v622 = vadd.f32 %v441, %v621
        %v623 = vpop.f32.mrf.mxu0
        %v624 = vadd.f32 %v441, %v623
        %625 = vmatmul.bf16.gmra.mxu0 %v513
        %v626 = vpop.f32.mrf.mxu0
        %v627 = vadd.f32 %v441, %v626
        %v628 = vpop.f32.mrf.mxu0
        %v629 = vadd.f32 %v441, %v628
        %630 = vmatmul.bf16.gmra.mxu0 %v514
        %v631 = vpop.f32.mrf.mxu0
        %v632 = vadd.f32 %v441, %v631
        %v633 = vpop.f32.mrf.mxu0
        %v634 = vadd.f32 %v441, %v633
        %635 = vmatmul.bf16.gmra.mxu0 %v515
        %v636 = vpop.f32.mrf.mxu0
        %v637 = vadd.f32 %v441, %v636
        %v638 = vpop.f32.mrf.mxu0
        %v639 = vadd.f32 %v441, %v638
        %640 = vmatmul.bf16.gmra.mxu0 %v516
        %v641 = vpop.f32.mrf.mxu0
        %v642 = vadd.f32 %v441, %v641
        %v643 = vpop.f32.mrf.mxu0
        %v644 = vadd.f32 %v441, %v643
        %645 = vmatmul.bf16.gmra.mxu0 %v517
        %v646 = vpop.f32.mrf.mxu0
        %v647 = vadd.f32 %v441, %v646
        %v648 = vpop.f32.mrf.mxu0
        %v649 = vadd.f32 %v441, %v648
        %650 = vmatmul.bf16.gmra.mxu0 %v518
        %v651 = vpop.f32.mrf.mxu0
        %v652 = vadd.f32 %v441, %v651
        %v653 = vpop.f32.mrf.mxu0
        %v654 = vadd.f32 %v441, %v653
        %655 = vmatmul.bf16.gmra.mxu0 %v519
        %v656 = vpop.f32.mrf.mxu0
        %v657 = vadd.f32 %v441, %v656
        %v658 = vpop.f32.mrf.mxu0
        %v659 = vadd.f32 %v441, %v658
        %660 = vmatmul.bf16.gmra.mxu0 %v520
        %v661 = vpop.f32.mrf.mxu0
        %v662 = vadd.f32 %v441, %v661
        %v663 = vpop.f32.mrf.mxu0
        %v664 = vadd.f32 %v441, %v663
        %665 = vmatmul.bf16.gmra.mxu0 %v521
        %v666 = vpop.f32.mrf.mxu0
        %v667 = vadd.f32 %v441, %v666
        %v668 = vpop.f32.mrf.mxu0
        %v669 = vadd.f32 %v441, %v668
        %670 = vmatmul.bf16.gmra.mxu0 %v522
        %v671 = vpop.f32.mrf.mxu0
        %v672 = vadd.f32 %v441, %v671
        %v673 = vpop.f32.mrf.mxu0
        %v674 = vadd.f32 %v441, %v673
        %675 = vdwg.mxu0
        %676 = vst [vmem:[%s375] sm:$0xff] %v597
        %677 = vst [vmem:[%s375 + $0x8] sm:$0xff] %v599
        %678 = vst [vmem:[%s375 + $0x10] sm:$0xff] %v602
        %679 = vst [vmem:[%s375 + $0x18] sm:$0xff] %v604
        %680 = vst [vmem:[%s375 + $0x20] sm:$0xff] %v607
        %681 = vst [vmem:[%s375 + $0x28] sm:$0xff] %v609
        %682 = vst [vmem:[%s375 + $0x30] sm:$0xff] %v612
        %683 = vst [vmem:[%s375 + $0x38] sm:$0xff] %v614
        %684 = vst [vmem:[%s375 + $0x40] sm:$0xff] %v617
        %685 = vst [vmem:[%s375 + $0x48] sm:$0xff] %v619
        %686 = vst [vmem:[%s375 + $0x50] sm:$0xff] %v622
        %687 = vst [vmem:[%s375 + $0x58] sm:$0xff] %v624
        %688 = vst [vmem:[%s375 + $0x60] sm:$0xff] %v627
        %689 = vst [vmem:[%s375 + $0x68] sm:$0xff] %v629
        %690 = vst [vmem:[%s375 + $0x70] sm:$0xff] %v632
        %691 = vst [vmem:[%s375 + $0x78] sm:$0xff] %v634
        %692 = vst [vmem:[%s375 + $0x80] sm:$0xff] %v637
        %693 = vst [vmem:[%s375 + $0x88] sm:$0xff] %v639
        %694 = vst [vmem:[%s375 + $0x90] sm:$0xff] %v642
        %695 = vst [vmem:[%s375 + $0x98] sm:$0xff] %v644
        %696 = vst [vmem:[%s375 + $0xa0] sm:$0xff] %v647
        %697 = vst [vmem:[%s375 + $0xa8] sm:$0xff] %v649
        %698 = vst [vmem:[%s375 + $0xb0] sm:$0xff] %v652
        %699 = vst [vmem:[%s375 + $0xb8] sm:$0xff] %v654
        %700 = vst [vmem:[%s375 + $0xc0] sm:$0xff] %v657
        %701 = vst [vmem:[%s375 + $0xc8] sm:$0xff] %v659
        %702 = vst [vmem:[%s375 + $0xd0] sm:$0xff] %v662
        %703 = vst [vmem:[%s375 + $0xd8] sm:$0xff] %v664
        %704 = vst [vmem:[%s375 + $0xe0] sm:$0xff] %v667
        %705 = vst [vmem:[%s375 + $0xe8] sm:$0xff] %v669
        %706 = vst [vmem:[%s375 + $0xf0] sm:$0xff] %v672
        %707 = vst [vmem:[%s375 + $0xf8] sm:$0xff] %v674
      $region48: #{_rgcn_pallas.1} parent=43 // pred_fallthru
        _
      // Predicated region
      $region49: #{_rgcn_pallas.1} parent=43 // pred_check
        %p708 = pneg %p381
      $region50: #{_rgcn_pallas.1} parent=43 // pred_check_branch
        %710 = sbr.rel (%p708) target = $region52
      $region51: #{_rgcn_pallas.1} parent=43 // pred_region
        %711 = vst [vmem:[#allocation2] sm:$0xff] 0.0
        %712 = vst [vmem:[#allocation2 + $0x8] sm:$0xff] 0.0
        %713 = vst [vmem:[#allocation2 + $0x10] sm:$0xff] 0.0
        %714 = vst [vmem:[#allocation2 + $0x18] sm:$0xff] 0.0
        %715 = vst [vmem:[#allocation2 + $0x20] sm:$0xff] 0.0
        %716 = vst [vmem:[#allocation2 + $0x28] sm:$0xff] 0.0
        %717 = vst [vmem:[#allocation2 + $0x30] sm:$0xff] 0.0
        %718 = vst [vmem:[#allocation2 + $0x38] sm:$0xff] 0.0
        %719 = vst [vmem:[#allocation2 + $0x40] sm:$0xff] 0.0
        %720 = vst [vmem:[#allocation2 + $0x48] sm:$0xff] 0.0
        %721 = vst [vmem:[#allocation2 + $0x50] sm:$0xff] 0.0
        %722 = vst [vmem:[#allocation2 + $0x58] sm:$0xff] 0.0
        %723 = vst [vmem:[#allocation2 + $0x60] sm:$0xff] 0.0
        %724 = vst [vmem:[#allocation2 + $0x68] sm:$0xff] 0.0
        %725 = vst [vmem:[#allocation2 + $0x70] sm:$0xff] 0.0
        %726 = vst [vmem:[#allocation2 + $0x78] sm:$0xff] 0.0
        %727 = vst [vmem:[#allocation2 + $0x80] sm:$0xff] 0.0
        %728 = vst [vmem:[#allocation2 + $0x88] sm:$0xff] 0.0
        %729 = vst [vmem:[#allocation2 + $0x90] sm:$0xff] 0.0
        %730 = vst [vmem:[#allocation2 + $0x98] sm:$0xff] 0.0
        %731 = vst [vmem:[#allocation2 + $0xa0] sm:$0xff] 0.0
        %732 = vst [vmem:[#allocation2 + $0xa8] sm:$0xff] 0.0
        %733 = vst [vmem:[#allocation2 + $0xb0] sm:$0xff] 0.0
        %734 = vst [vmem:[#allocation2 + $0xb8] sm:$0xff] 0.0
        %735 = vst [vmem:[#allocation2 + $0xc0] sm:$0xff] 0.0
        %736 = vst [vmem:[#allocation2 + $0xc8] sm:$0xff] 0.0
        %737 = vst [vmem:[#allocation2 + $0xd0] sm:$0xff] 0.0
        %738 = vst [vmem:[#allocation2 + $0xd8] sm:$0xff] 0.0
        %739 = vst [vmem:[#allocation2 + $0xe0] sm:$0xff] 0.0
        %740 = vst [vmem:[#allocation2 + $0xe8] sm:$0xff] 0.0
        %741 = vst [vmem:[#allocation2 + $0xf0] sm:$0xff] 0.0
        %742 = vst [vmem:[#allocation2 + $0xf8] sm:$0xff] 0.0
      $region52: #{_rgcn_pallas.1} parent=43 // pred_fallthru
        _
      %p743 = scmp.lt.s32.totalorder %s45, %s379
      // Predicated region
      $region53: #{_rgcn_pallas.1} parent=43 // pred_check
        %p744 = pneg %p743
      $region54: #{_rgcn_pallas.1} parent=43 // pred_check_branch
        %746 = sbr.rel (%p744) target = $region56
      $region55: #{_rgcn_pallas.1} parent=43 // pred_region
        %s747 = sadd.s32 %s378, %s45
        %s748 = sld [smem:[#allocation5 + %s747]]
        %s749 = smul.u32 %s748, 512
        %s750 = sshra.s32 %s749, 3
        %s751 = sand.u32 %s749, 7
        %s752 = smul.addr %s750, 4
        %s753 = scalar_lea.vmem %s4, %s752
        %v754 = vld [vmem:[%s753] sm:$0xf]
        %v755 = vld [vmem:[%s753 + $0x4] sm:$0xf]
        %v756 = vld [vmem:[%s753 + $0x8] sm:$0xf]
        %v757 = vld [vmem:[%s753 + $0xc] sm:$0xf]
        %v758 = vld [vmem:[%s753 + $0x10] sm:$0xf]
        %v759 = vld [vmem:[%s753 + $0x14] sm:$0xf]
        %v760 = vld [vmem:[%s753 + $0x18] sm:$0xf]
        %v761 = vld [vmem:[%s753 + $0x1c] sm:$0xf]
        %v762 = vld [vmem:[%s753 + $0x20] sm:$0xf]
        %v763 = vld [vmem:[%s753 + $0x24] sm:$0xf]
        %v764 = vld [vmem:[%s753 + $0x28] sm:$0xf]
        %v765 = vld [vmem:[%s753 + $0x2c] sm:$0xf]
        %v766 = vld [vmem:[%s753 + $0x30] sm:$0xf]
        %v767 = vld [vmem:[%s753 + $0x34] sm:$0xf]
        %v768 = vld [vmem:[%s753 + $0x38] sm:$0xf]
        %v769 = vld [vmem:[%s753 + $0x3c] sm:$0xf]
        %v770 = vld [vmem:[%s753 + $0x40] sm:$0xf]
        %v771 = vld [vmem:[%s753 + $0x44] sm:$0xf]
        %v772 = vld [vmem:[%s753 + $0x48] sm:$0xf]
        %v773 = vld [vmem:[%s753 + $0x4c] sm:$0xf]
        %v774 = vld [vmem:[%s753 + $0x50] sm:$0xf]
        %v775 = vld [vmem:[%s753 + $0x54] sm:$0xf]
        %v776 = vld [vmem:[%s753 + $0x58] sm:$0xf]
        %v777 = vld [vmem:[%s753 + $0x5c] sm:$0xf]
        %v778 = vld [vmem:[%s753 + $0x60] sm:$0xf]
        %v779 = vld [vmem:[%s753 + $0x64] sm:$0xf]
        %v780 = vld [vmem:[%s753 + $0x68] sm:$0xf]
        %v781 = vld [vmem:[%s753 + $0x6c] sm:$0xf]
        %v782 = vld [vmem:[%s753 + $0x70] sm:$0xf]
        %v783 = vld [vmem:[%s753 + $0x74] sm:$0xf]
        %v784 = vld [vmem:[%s753 + $0x78] sm:$0xf]
        %v785 = vld [vmem:[%s753 + $0x7c] sm:$0xf]
        %v786 = vld [vmem:[%s753 + $0x80] sm:$0xf]
        %v787 = vld [vmem:[%s753 + $0x84] sm:$0xf]
        %v788 = vld [vmem:[%s753 + $0x88] sm:$0xf]
        %v789 = vld [vmem:[%s753 + $0x8c] sm:$0xf]
        %v790 = vld [vmem:[%s753 + $0x90] sm:$0xf]
        %v791 = vld [vmem:[%s753 + $0x94] sm:$0xf]
        %v792 = vld [vmem:[%s753 + $0x98] sm:$0xf]
        %v793 = vld [vmem:[%s753 + $0x9c] sm:$0xf]
        %v794 = vld [vmem:[%s753 + $0xa0] sm:$0xf]
        %v795 = vld [vmem:[%s753 + $0xa4] sm:$0xf]
        %v796 = vld [vmem:[%s753 + $0xa8] sm:$0xf]
        %v797 = vld [vmem:[%s753 + $0xac] sm:$0xf]
        %v798 = vld [vmem:[%s753 + $0xb0] sm:$0xf]
        %v799 = vld [vmem:[%s753 + $0xb4] sm:$0xf]
        %v800 = vld [vmem:[%s753 + $0xb8] sm:$0xf]
        %v801 = vld [vmem:[%s753 + $0xbc] sm:$0xf]
        %v802 = vld [vmem:[%s753 + $0xc0] sm:$0xf]
        %v803 = vld [vmem:[%s753 + $0xc4] sm:$0xf]
        %v804 = vld [vmem:[%s753 + $0xc8] sm:$0xf]
        %v805 = vld [vmem:[%s753 + $0xcc] sm:$0xf]
        %v806 = vld [vmem:[%s753 + $0xd0] sm:$0xf]
        %v807 = vld [vmem:[%s753 + $0xd4] sm:$0xf]
        %v808 = vld [vmem:[%s753 + $0xd8] sm:$0xf]
        %v809 = vld [vmem:[%s753 + $0xdc] sm:$0xf]
        %v810 = vld [vmem:[%s753 + $0xe0] sm:$0xf]
        %v811 = vld [vmem:[%s753 + $0xe4] sm:$0xf]
        %v812 = vld [vmem:[%s753 + $0xe8] sm:$0xf]
        %v813 = vld [vmem:[%s753 + $0xec] sm:$0xf]
        %v814 = vld [vmem:[%s753 + $0xf0] sm:$0xf]
        %v815 = vld [vmem:[%s753 + $0xf4] sm:$0xf]
        %v816 = vld [vmem:[%s753 + $0xf8] sm:$0xf]
        %v817 = vld [vmem:[%s753 + $0xfc] sm:$0xf]
        %v818 = vld [vmem:[#allocation2] sm:$0xff]
        %v819 = vld [vmem:[#allocation2 + $0x8] sm:$0xff]
        %v820 = vld [vmem:[#allocation2 + $0x10] sm:$0xff]
        %v821 = vld [vmem:[#allocation2 + $0x18] sm:$0xff]
        %v822 = vld [vmem:[#allocation2 + $0x20] sm:$0xff]
        %v823 = vld [vmem:[#allocation2 + $0x28] sm:$0xff]
        %v824 = vld [vmem:[#allocation2 + $0x30] sm:$0xff]
        %v825 = vld [vmem:[#allocation2 + $0x38] sm:$0xff]
        %v826 = vld [vmem:[#allocation2 + $0x40] sm:$0xff]
        %v827 = vld [vmem:[#allocation2 + $0x48] sm:$0xff]
        %v828 = vld [vmem:[#allocation2 + $0x50] sm:$0xff]
        %v829 = vld [vmem:[#allocation2 + $0x58] sm:$0xff]
        %v830 = vld [vmem:[#allocation2 + $0x60] sm:$0xff]
        %v831 = vld [vmem:[#allocation2 + $0x68] sm:$0xff]
        %v832 = vld [vmem:[#allocation2 + $0x70] sm:$0xff]
        %v833 = vld [vmem:[#allocation2 + $0x78] sm:$0xff]
        %v834 = vld [vmem:[#allocation2 + $0x80] sm:$0xff]
        %v835 = vld [vmem:[#allocation2 + $0x88] sm:$0xff]
        %v836 = vld [vmem:[#allocation2 + $0x90] sm:$0xff]
        %v837 = vld [vmem:[#allocation2 + $0x98] sm:$0xff]
        %v838 = vld [vmem:[#allocation2 + $0xa0] sm:$0xff]
        %v839 = vld [vmem:[#allocation2 + $0xa8] sm:$0xff]
        %v840 = vld [vmem:[#allocation2 + $0xb0] sm:$0xff]
        %v841 = vld [vmem:[#allocation2 + $0xb8] sm:$0xff]
        %v842 = vld [vmem:[#allocation2 + $0xc0] sm:$0xff]
        %v843 = vld [vmem:[#allocation2 + $0xc8] sm:$0xff]
        %v844 = vld [vmem:[#allocation2 + $0xd0] sm:$0xff]
        %v845 = vld [vmem:[#allocation2 + $0xd8] sm:$0xff]
        %v846 = vld [vmem:[#allocation2 + $0xe0] sm:$0xff]
        %v847 = vld [vmem:[#allocation2 + $0xe8] sm:$0xff]
        %v848 = vld [vmem:[#allocation2 + $0xf0] sm:$0xff]
        %v849 = vld [vmem:[#allocation2 + $0xf8] sm:$0xff]
        %v850 = vld [vmem:[%s351] sm:$0xff]
        %v851 = vld [vmem:[%s351 + $0x8] sm:$0xff]
        %v852 = vld [vmem:[%s351 + $0x10] sm:$0xff]
        %v853 = vld [vmem:[%s351 + $0x18] sm:$0xff]
        %v854 = vld [vmem:[%s351 + $0x20] sm:$0xff]
        %v855 = vld [vmem:[%s351 + $0x28] sm:$0xff]
        %v856 = vld [vmem:[%s351 + $0x30] sm:$0xff]
        %v857 = vld [vmem:[%s351 + $0x38] sm:$0xff]
        %v858 = vld [vmem:[%s351 + $0x40] sm:$0xff]
        %v859 = vld [vmem:[%s351 + $0x48] sm:$0xff]
        %v860 = vld [vmem:[%s351 + $0x50] sm:$0xff]
        %v861 = vld [vmem:[%s351 + $0x58] sm:$0xff]
        %v862 = vld [vmem:[%s351 + $0x60] sm:$0xff]
        %v863 = vld [vmem:[%s351 + $0x68] sm:$0xff]
        %v864 = vld [vmem:[%s351 + $0x70] sm:$0xff]
        %v865 = vld [vmem:[%s351 + $0x78] sm:$0xff]
        %v866 = vld [vmem:[%s351 + $0x80] sm:$0xff]
        %v867 = vld [vmem:[%s351 + $0x88] sm:$0xff]
        %v868 = vld [vmem:[%s351 + $0x90] sm:$0xff]
        %v869 = vld [vmem:[%s351 + $0x98] sm:$0xff]
        %v870 = vld [vmem:[%s351 + $0xa0] sm:$0xff]
        %v871 = vld [vmem:[%s351 + $0xa8] sm:$0xff]
        %v872 = vld [vmem:[%s351 + $0xb0] sm:$0xff]
        %v873 = vld [vmem:[%s351 + $0xb8] sm:$0xff]
        %v874 = vld [vmem:[%s351 + $0xc0] sm:$0xff]
        %v875 = vld [vmem:[%s351 + $0xc8] sm:$0xff]
        %v876 = vld [vmem:[%s351 + $0xd0] sm:$0xff]
        %v877 = vld [vmem:[%s351 + $0xd8] sm:$0xff]
        %v878 = vld [vmem:[%s351 + $0xe0] sm:$0xff]
        %v879 = vld [vmem:[%s351 + $0xe8] sm:$0xff]
        %v880 = vld [vmem:[%s351 + $0xf0] sm:$0xff]
        %v881 = vld [vmem:[%s351 + $0xf8] sm:$0xff]
        %v882 = vld [vmem:[%s351 + $0x100] sm:$0xff]
        %v883 = vld [vmem:[%s351 + $0x108] sm:$0xff]
        %v884 = vld [vmem:[%s351 + $0x110] sm:$0xff]
        %v885 = vld [vmem:[%s351 + $0x118] sm:$0xff]
        %v886 = vld [vmem:[%s351 + $0x120] sm:$0xff]
        %v887 = vld [vmem:[%s351 + $0x128] sm:$0xff]
        %v888 = vld [vmem:[%s351 + $0x130] sm:$0xff]
        %v889 = vld [vmem:[%s351 + $0x138] sm:$0xff]
        %v890 = vld [vmem:[%s351 + $0x140] sm:$0xff]
        %v891 = vld [vmem:[%s351 + $0x148] sm:$0xff]
        %v892 = vld [vmem:[%s351 + $0x150] sm:$0xff]
        %v893 = vld [vmem:[%s351 + $0x158] sm:$0xff]
        %v894 = vld [vmem:[%s351 + $0x160] sm:$0xff]
        %v895 = vld [vmem:[%s351 + $0x168] sm:$0xff]
        %v896 = vld [vmem:[%s351 + $0x170] sm:$0xff]
        %v897 = vld [vmem:[%s351 + $0x178] sm:$0xff]
        %v898 = vld [vmem:[%s351 + $0x180] sm:$0xff]
        %v899 = vld [vmem:[%s351 + $0x188] sm:$0xff]
        %v900 = vld [vmem:[%s351 + $0x190] sm:$0xff]
        %v901 = vld [vmem:[%s351 + $0x198] sm:$0xff]
        %v902 = vld [vmem:[%s351 + $0x1a0] sm:$0xff]
        %v903 = vld [vmem:[%s351 + $0x1a8] sm:$0xff]
        %v904 = vld [vmem:[%s351 + $0x1b0] sm:$0xff]
        %v905 = vld [vmem:[%s351 + $0x1b8] sm:$0xff]
        %v906 = vld [vmem:[%s351 + $0x1c0] sm:$0xff]
        %v907 = vld [vmem:[%s351 + $0x1c8] sm:$0xff]
        %v908 = vld [vmem:[%s351 + $0x1d0] sm:$0xff]
        %v909 = vld [vmem:[%s351 + $0x1d8] sm:$0xff]
        %v910 = vld [vmem:[%s351 + $0x1e0] sm:$0xff]
        %v911 = vld [vmem:[%s351 + $0x1e8] sm:$0xff]
        %v912 = vld [vmem:[%s351 + $0x1f0] sm:$0xff]
        %v913 = vld [vmem:[%s351 + $0x1f8] sm:$0xff]
        %v978 = vunpack.c.l.b16 %v850
        %v979 = vunpack.c.h.b16 %v850
        %v980 = vunpack.c.l.b16 %v851
        %v981 = vunpack.c.h.b16 %v851
        %v982 = vunpack.c.l.b16 %v852
        %v983 = vunpack.c.h.b16 %v852
        %v984 = vunpack.c.l.b16 %v853
        %v985 = vunpack.c.h.b16 %v853
        %v986 = vunpack.c.l.b16 %v854
        %v987 = vunpack.c.h.b16 %v854
        %v988 = vunpack.c.l.b16 %v855
        %v989 = vunpack.c.h.b16 %v855
        %v990 = vunpack.c.l.b16 %v856
        %v991 = vunpack.c.h.b16 %v856
        %v992 = vunpack.c.l.b16 %v857
        %v993 = vunpack.c.h.b16 %v857
        %v994 = vunpack.c.l.b16 %v858
        %v995 = vunpack.c.h.b16 %v858
        %v996 = vunpack.c.l.b16 %v859
        %v997 = vunpack.c.h.b16 %v859
        %v998 = vunpack.c.l.b16 %v860
        %v999 = vunpack.c.h.b16 %v860
        %v1000 = vunpack.c.l.b16 %v861
        %v1001 = vunpack.c.h.b16 %v861
        %v1002 = vunpack.c.l.b16 %v862
        %v1003 = vunpack.c.h.b16 %v862
        %v1004 = vunpack.c.l.b16 %v863
        %v1005 = vunpack.c.h.b16 %v863
        %v1006 = vunpack.c.l.b16 %v864
        %v1007 = vunpack.c.h.b16 %v864
        %v1008 = vunpack.c.l.b16 %v865
        %v1009 = vunpack.c.h.b16 %v865
        %v1010 = vunpack.c.l.b16 %v866
        %v1011 = vunpack.c.h.b16 %v866
        %v1012 = vunpack.c.l.b16 %v867
        %v1013 = vunpack.c.h.b16 %v867
        %v1014 = vunpack.c.l.b16 %v868
        %v1015 = vunpack.c.h.b16 %v868
        %v1016 = vunpack.c.l.b16 %v869
        %v1017 = vunpack.c.h.b16 %v869
        %v1018 = vunpack.c.l.b16 %v870
        %v1019 = vunpack.c.h.b16 %v870
        %v1020 = vunpack.c.l.b16 %v871
        %v1021 = vunpack.c.h.b16 %v871
        %v1022 = vunpack.c.l.b16 %v872
        %v1023 = vunpack.c.h.b16 %v872
        %v1024 = vunpack.c.l.b16 %v873
        %v1025 = vunpack.c.h.b16 %v873
        %v1026 = vunpack.c.l.b16 %v874
        %v1027 = vunpack.c.h.b16 %v874
        %v1028 = vunpack.c.l.b16 %v875
        %v1029 = vunpack.c.h.b16 %v875
        %v1030 = vunpack.c.l.b16 %v876
        %v1031 = vunpack.c.h.b16 %v876
        %v1032 = vunpack.c.l.b16 %v877
        %v1033 = vunpack.c.h.b16 %v877
        %v1034 = vunpack.c.l.b16 %v878
        %v1035 = vunpack.c.h.b16 %v878
        %v1036 = vunpack.c.l.b16 %v879
        %v1037 = vunpack.c.h.b16 %v879
        %v1038 = vunpack.c.l.b16 %v880
        %v1039 = vunpack.c.h.b16 %v880
        %v1040 = vunpack.c.l.b16 %v881
        %v1041 = vunpack.c.h.b16 %v881
        %v1042 = vunpack.c.l.b16 %v882
        %v1043 = vunpack.c.h.b16 %v882
        %v1044 = vunpack.c.l.b16 %v883
        %v1045 = vunpack.c.h.b16 %v883
        %v1046 = vunpack.c.l.b16 %v884
        %v1047 = vunpack.c.h.b16 %v884
        %v1048 = vunpack.c.l.b16 %v885
        %v1049 = vunpack.c.h.b16 %v885
        %v1050 = vunpack.c.l.b16 %v886
        %v1051 = vunpack.c.h.b16 %v886
        %v1052 = vunpack.c.l.b16 %v887
        %v1053 = vunpack.c.h.b16 %v887
        %v1054 = vunpack.c.l.b16 %v888
        %v1055 = vunpack.c.h.b16 %v888
        %v1056 = vunpack.c.l.b16 %v889
        %v1057 = vunpack.c.h.b16 %v889
        %v1058 = vunpack.c.l.b16 %v890
        %v1059 = vunpack.c.h.b16 %v890
        %v1060 = vunpack.c.l.b16 %v891
        %v1061 = vunpack.c.h.b16 %v891
        %v1062 = vunpack.c.l.b16 %v892
        %v1063 = vunpack.c.h.b16 %v892
        %v1064 = vunpack.c.l.b16 %v893
        %v1065 = vunpack.c.h.b16 %v893
        %v1066 = vunpack.c.l.b16 %v894
        %v1067 = vunpack.c.h.b16 %v894
        %v1068 = vunpack.c.l.b16 %v895
        %v1069 = vunpack.c.h.b16 %v895
        %v1070 = vunpack.c.l.b16 %v896
        %v1071 = vunpack.c.h.b16 %v896
        %v1072 = vunpack.c.l.b16 %v897
        %v1073 = vunpack.c.h.b16 %v897
        %v1074 = vunpack.c.l.b16 %v898
        %v1075 = vunpack.c.h.b16 %v898
        %v1076 = vunpack.c.l.b16 %v899
        %v1077 = vunpack.c.h.b16 %v899
        %v1078 = vunpack.c.l.b16 %v900
        %v1079 = vunpack.c.h.b16 %v900
        %v1080 = vunpack.c.l.b16 %v901
        %v1081 = vunpack.c.h.b16 %v901
        %v1082 = vunpack.c.l.b16 %v902
        %v1083 = vunpack.c.h.b16 %v902
        %v1084 = vunpack.c.l.b16 %v903
        %v1085 = vunpack.c.h.b16 %v903
        %v1086 = vunpack.c.l.b16 %v904
        %v1087 = vunpack.c.h.b16 %v904
        %v1088 = vunpack.c.l.b16 %v905
        %v1089 = vunpack.c.h.b16 %v905
        %v1090 = vunpack.c.l.b16 %v906
        %v1091 = vunpack.c.h.b16 %v906
        %v1092 = vunpack.c.l.b16 %v907
        %v1093 = vunpack.c.h.b16 %v907
        %v1094 = vunpack.c.l.b16 %v908
        %v1095 = vunpack.c.h.b16 %v908
        %v1096 = vunpack.c.l.b16 %v909
        %v1097 = vunpack.c.h.b16 %v909
        %v1098 = vunpack.c.l.b16 %v910
        %v1099 = vunpack.c.h.b16 %v910
        %v1100 = vunpack.c.l.b16 %v911
        %v1101 = vunpack.c.h.b16 %v911
        %v1102 = vunpack.c.l.b16 %v912
        %v1103 = vunpack.c.h.b16 %v912
        %v1104 = vunpack.c.l.b16 %v913
        %v1105 = vunpack.c.h.b16 %v913
        %v1106 = vpack.c.b16 %v982, %v978
        %v1107 = vpack.c.b16 %v983, %v979
        %v1108 = vpack.c.b16 %v984, %v980
        %v1109 = vpack.c.b16 %v985, %v981
        %v1110 = vpack.c.b16 %v990, %v986
        %v1111 = vpack.c.b16 %v991, %v987
        %v1112 = vpack.c.b16 %v992, %v988
        %v1113 = vpack.c.b16 %v993, %v989
        %v1114 = vpack.c.b16 %v998, %v994
        %v1115 = vpack.c.b16 %v999, %v995
        %v1116 = vpack.c.b16 %v1000, %v996
        %v1117 = vpack.c.b16 %v1001, %v997
        %v1118 = vpack.c.b16 %v1006, %v1002
        %v1119 = vpack.c.b16 %v1007, %v1003
        %v1120 = vpack.c.b16 %v1008, %v1004
        %v1121 = vpack.c.b16 %v1009, %v1005
        %v1122 = vpack.c.b16 %v1014, %v1010
        %v1123 = vpack.c.b16 %v1015, %v1011
        %v1124 = vpack.c.b16 %v1016, %v1012
        %v1125 = vpack.c.b16 %v1017, %v1013
        %v1126 = vpack.c.b16 %v1022, %v1018
        %v1127 = vpack.c.b16 %v1023, %v1019
        %v1128 = vpack.c.b16 %v1024, %v1020
        %v1129 = vpack.c.b16 %v1025, %v1021
        %v1130 = vpack.c.b16 %v1030, %v1026
        %v1131 = vpack.c.b16 %v1031, %v1027
        %v1132 = vpack.c.b16 %v1032, %v1028
        %v1133 = vpack.c.b16 %v1033, %v1029
        %v1134 = vpack.c.b16 %v1038, %v1034
        %v1135 = vpack.c.b16 %v1039, %v1035
        %v1136 = vpack.c.b16 %v1040, %v1036
        %v1137 = vpack.c.b16 %v1041, %v1037
        %v1138 = vpack.c.b16 %v1046, %v1042
        %v1139 = vpack.c.b16 %v1047, %v1043
        %v1140 = vpack.c.b16 %v1048, %v1044
        %v1141 = vpack.c.b16 %v1049, %v1045
        %v1142 = vpack.c.b16 %v1054, %v1050
        %v1143 = vpack.c.b16 %v1055, %v1051
        %v1144 = vpack.c.b16 %v1056, %v1052
        %v1145 = vpack.c.b16 %v1057, %v1053
        %v1146 = vpack.c.b16 %v1062, %v1058
        %v1147 = vpack.c.b16 %v1063, %v1059
        %v1148 = vpack.c.b16 %v1064, %v1060
        %v1149 = vpack.c.b16 %v1065, %v1061
        %v1150 = vpack.c.b16 %v1070, %v1066
        %v1151 = vpack.c.b16 %v1071, %v1067
        %v1152 = vpack.c.b16 %v1072, %v1068
        %v1153 = vpack.c.b16 %v1073, %v1069
        %v1154 = vpack.c.b16 %v1078, %v1074
        %v1155 = vpack.c.b16 %v1079, %v1075
        %v1156 = vpack.c.b16 %v1080, %v1076
        %v1157 = vpack.c.b16 %v1081, %v1077
        %v1158 = vpack.c.b16 %v1086, %v1082
        %v1159 = vpack.c.b16 %v1087, %v1083
        %v1160 = vpack.c.b16 %v1088, %v1084
        %v1161 = vpack.c.b16 %v1089, %v1085
        %v1162 = vpack.c.b16 %v1094, %v1090
        %v1163 = vpack.c.b16 %v1095, %v1091
        %v1164 = vpack.c.b16 %v1096, %v1092
        %v1165 = vpack.c.b16 %v1097, %v1093
        %v1166 = vpack.c.b16 %v1102, %v1098
        %v1167 = vpack.c.b16 %v1103, %v1099
        %v1168 = vpack.c.b16 %v1104, %v1100
        %v1169 = vpack.c.b16 %v1105, %v1101
        %v1298 = vunpack.c.l.b16 %v754
        %v1299 = vunpack.c.l.b16 %v755
        %v1300 = vunpack.c.l.b16 %v756
        %v1301 = vunpack.c.l.b16 %v757
        %v1302 = vunpack.c.l.b16 %v758
        %v1303 = vunpack.c.l.b16 %v759
        %v1304 = vunpack.c.l.b16 %v760
        %v1305 = vunpack.c.l.b16 %v761
        %v1306 = vunpack.c.l.b16 %v762
        %v1307 = vunpack.c.l.b16 %v763
        %v1308 = vunpack.c.l.b16 %v764
        %v1309 = vunpack.c.l.b16 %v765
        %v1310 = vunpack.c.l.b16 %v766
        %v1311 = vunpack.c.l.b16 %v767
        %v1312 = vunpack.c.l.b16 %v768
        %v1313 = vunpack.c.l.b16 %v769
        %v1314 = vunpack.c.l.b16 %v770
        %v1315 = vunpack.c.l.b16 %v771
        %v1316 = vunpack.c.l.b16 %v772
        %v1317 = vunpack.c.l.b16 %v773
        %v1318 = vunpack.c.l.b16 %v774
        %v1319 = vunpack.c.l.b16 %v775
        %v1320 = vunpack.c.l.b16 %v776
        %v1321 = vunpack.c.l.b16 %v777
        %v1322 = vunpack.c.l.b16 %v778
        %v1323 = vunpack.c.l.b16 %v779
        %v1324 = vunpack.c.l.b16 %v780
        %v1325 = vunpack.c.l.b16 %v781
        %v1326 = vunpack.c.l.b16 %v782
        %v1327 = vunpack.c.l.b16 %v783
        %v1328 = vunpack.c.l.b16 %v784
        %v1329 = vunpack.c.l.b16 %v785
        %v1330 = vunpack.c.l.b16 %v786
        %v1331 = vunpack.c.l.b16 %v787
        %v1332 = vunpack.c.l.b16 %v788
        %v1333 = vunpack.c.l.b16 %v789
        %v1334 = vunpack.c.l.b16 %v790
        %v1335 = vunpack.c.l.b16 %v791
        %v1336 = vunpack.c.l.b16 %v792
        %v1337 = vunpack.c.l.b16 %v793
        %v1338 = vunpack.c.l.b16 %v794
        %v1339 = vunpack.c.l.b16 %v795
        %v1340 = vunpack.c.l.b16 %v796
        %v1341 = vunpack.c.l.b16 %v797
        %v1342 = vunpack.c.l.b16 %v798
        %v1343 = vunpack.c.l.b16 %v799
        %v1344 = vunpack.c.l.b16 %v800
        %v1345 = vunpack.c.l.b16 %v801
        %v1346 = vunpack.c.l.b16 %v802
        %v1347 = vunpack.c.l.b16 %v803
        %v1348 = vunpack.c.l.b16 %v804
        %v1349 = vunpack.c.l.b16 %v805
        %v1350 = vunpack.c.l.b16 %v806
        %v1351 = vunpack.c.l.b16 %v807
        %v1352 = vunpack.c.l.b16 %v808
        %v1353 = vunpack.c.l.b16 %v809
        %v1354 = vunpack.c.l.b16 %v810
        %v1355 = vunpack.c.l.b16 %v811
        %v1356 = vunpack.c.l.b16 %v812
        %v1357 = vunpack.c.l.b16 %v813
        %v1358 = vunpack.c.l.b16 %v814
        %v1359 = vunpack.c.l.b16 %v815
        %v1360 = vunpack.c.l.b16 %v816
        %v1361 = vunpack.c.l.b16 %v817
        %v1362 = vpack.c.b16 %v1299, %v1298
        %v1363 = vpack.c.b16 %v1301, %v1300
        %v1364 = vpack.c.b16 %v1303, %v1302
        %v1365 = vpack.c.b16 %v1305, %v1304
        %v1366 = vpack.c.b16 %v1307, %v1306
        %v1367 = vpack.c.b16 %v1309, %v1308
        %v1368 = vpack.c.b16 %v1311, %v1310
        %v1369 = vpack.c.b16 %v1313, %v1312
        %v1370 = vpack.c.b16 %v1315, %v1314
        %v1371 = vpack.c.b16 %v1317, %v1316
        %v1372 = vpack.c.b16 %v1319, %v1318
        %v1373 = vpack.c.b16 %v1321, %v1320
        %v1374 = vpack.c.b16 %v1323, %v1322
        %v1375 = vpack.c.b16 %v1325, %v1324
        %v1376 = vpack.c.b16 %v1327, %v1326
        %v1377 = vpack.c.b16 %v1329, %v1328
        %v1378 = vpack.c.b16 %v1331, %v1330
        %v1379 = vpack.c.b16 %v1333, %v1332
        %v1380 = vpack.c.b16 %v1335, %v1334
        %v1381 = vpack.c.b16 %v1337, %v1336
        %v1382 = vpack.c.b16 %v1339, %v1338
        %v1383 = vpack.c.b16 %v1341, %v1340
        %v1384 = vpack.c.b16 %v1343, %v1342
        %v1385 = vpack.c.b16 %v1345, %v1344
        %v1386 = vpack.c.b16 %v1347, %v1346
        %v1387 = vpack.c.b16 %v1349, %v1348
        %v1388 = vpack.c.b16 %v1351, %v1350
        %v1389 = vpack.c.b16 %v1353, %v1352
        %v1390 = vpack.c.b16 %v1355, %v1354
        %v1391 = vpack.c.b16 %v1357, %v1356
        %v1392 = vpack.c.b16 %v1359, %v1358
        %v1393 = vpack.c.b16 %v1361, %v1360
        %1426 = vmatpush.bf16.msra.mxu0 %v1369
        %1427 = vmatpush.bf16.msra.mxu0 %v1368
        %1428 = vmatpush.bf16.msra.mxu0 %v1367
        %1429 = vmatpush.bf16.msra.mxu0 %v1366
        %1430 = vmatpush.bf16.msra.mxu0 %v1365
        %1431 = vmatpush.bf16.msra.mxu0 %v1364
        %1432 = vmatpush.bf16.msra.mxu0 %v1363
        %1433 = vmatpush.bf16.msra.mxu0 %v1362
        %1434 = vmatmul.bf16.gmra.mxu0 %v1106
        %v1435 = vpop.f32.mrf.mxu0
        %v1436 = vadd.f32 0.0, %v1435
        %v1437 = vpop.f32.mrf.mxu0
        %v1438 = vadd.f32 0.0, %v1437
        %1439 = vmatmul.bf16.gmra.mxu0 %v1110
        %v1440 = vpop.f32.mrf.mxu0
        %v1441 = vadd.f32 0.0, %v1440
        %v1442 = vpop.f32.mrf.mxu0
        %v1443 = vadd.f32 0.0, %v1442
        %1444 = vmatmul.bf16.gmra.mxu0 %v1114
        %v1445 = vpop.f32.mrf.mxu0
        %v1446 = vadd.f32 0.0, %v1445
        %v1447 = vpop.f32.mrf.mxu0
        %v1448 = vadd.f32 0.0, %v1447
        %1449 = vmatmul.bf16.gmra.mxu0 %v1118
        %v1450 = vpop.f32.mrf.mxu0
        %v1451 = vadd.f32 0.0, %v1450
        %v1452 = vpop.f32.mrf.mxu0
        %v1453 = vadd.f32 0.0, %v1452
        %1454 = vmatmul.bf16.gmra.mxu0 %v1122
        %v1455 = vpop.f32.mrf.mxu0
        %v1456 = vadd.f32 0.0, %v1455
        %v1457 = vpop.f32.mrf.mxu0
        %v1458 = vadd.f32 0.0, %v1457
        %1459 = vmatmul.bf16.gmra.mxu0 %v1126
        %v1460 = vpop.f32.mrf.mxu0
        %v1461 = vadd.f32 0.0, %v1460
        %v1462 = vpop.f32.mrf.mxu0
        %v1463 = vadd.f32 0.0, %v1462
        %1464 = vmatmul.bf16.gmra.mxu0 %v1130
        %v1465 = vpop.f32.mrf.mxu0
        %v1466 = vadd.f32 0.0, %v1465
        %v1467 = vpop.f32.mrf.mxu0
        %v1468 = vadd.f32 0.0, %v1467
        %1469 = vmatmul.bf16.gmra.mxu0 %v1134
        %v1470 = vpop.f32.mrf.mxu0
        %v1471 = vadd.f32 0.0, %v1470
        %v1472 = vpop.f32.mrf.mxu0
        %v1473 = vadd.f32 0.0, %v1472
        %1474 = vmatmul.bf16.gmra.mxu0 %v1138
        %v1475 = vpop.f32.mrf.mxu0
        %v1476 = vadd.f32 0.0, %v1475
        %v1477 = vpop.f32.mrf.mxu0
        %v1478 = vadd.f32 0.0, %v1477
        %1479 = vmatmul.bf16.gmra.mxu0 %v1142
        %v1480 = vpop.f32.mrf.mxu0
        %v1481 = vadd.f32 0.0, %v1480
        %v1482 = vpop.f32.mrf.mxu0
        %v1483 = vadd.f32 0.0, %v1482
        %1484 = vmatmul.bf16.gmra.mxu0 %v1146
        %v1485 = vpop.f32.mrf.mxu0
        %v1486 = vadd.f32 0.0, %v1485
        %v1487 = vpop.f32.mrf.mxu0
        %v1488 = vadd.f32 0.0, %v1487
        %1489 = vmatmul.bf16.gmra.mxu0 %v1150
        %v1490 = vpop.f32.mrf.mxu0
        %v1491 = vadd.f32 0.0, %v1490
        %v1492 = vpop.f32.mrf.mxu0
        %v1493 = vadd.f32 0.0, %v1492
        %1494 = vmatmul.bf16.gmra.mxu0 %v1154
        %v1495 = vpop.f32.mrf.mxu0
        %v1496 = vadd.f32 0.0, %v1495
        %v1497 = vpop.f32.mrf.mxu0
        %v1498 = vadd.f32 0.0, %v1497
        %1499 = vmatmul.bf16.gmra.mxu0 %v1158
        %v1500 = vpop.f32.mrf.mxu0
        %v1501 = vadd.f32 0.0, %v1500
        %v1502 = vpop.f32.mrf.mxu0
        %v1503 = vadd.f32 0.0, %v1502
        %1504 = vmatmul.bf16.gmra.mxu0 %v1162
        %v1505 = vpop.f32.mrf.mxu0
        %v1506 = vadd.f32 0.0, %v1505
        %v1507 = vpop.f32.mrf.mxu0
        %v1508 = vadd.f32 0.0, %v1507
        %1509 = vmatmul.bf16.gmra.mxu0 %v1166
        %v1510 = vpop.f32.mrf.mxu0
        %v1511 = vadd.f32 0.0, %v1510
        %v1512 = vpop.f32.mrf.mxu0
        %v1513 = vadd.f32 0.0, %v1512
        %1514 = vdwg.mxu0
        %1515 = vmatpush.bf16.msra.mxu0 %v1377
        %1516 = vmatpush.bf16.msra.mxu0 %v1376
        %1517 = vmatpush.bf16.msra.mxu0 %v1375
        %1518 = vmatpush.bf16.msra.mxu0 %v1374
        %1519 = vmatpush.bf16.msra.mxu0 %v1373
        %1520 = vmatpush.bf16.msra.mxu0 %v1372
        %1521 = vmatpush.bf16.msra.mxu0 %v1371
        %1522 = vmatpush.bf16.msra.mxu0 %v1370
        %1523 = vmatmul.bf16.gmra.mxu0 %v1107
        %v1524 = vpop.f32.mrf.mxu0
        %v1525 = vadd.f32 %v1436, %v1524
        %v1526 = vpop.f32.mrf.mxu0
        %v1527 = vadd.f32 %v1438, %v1526
        %1528 = vmatmul.bf16.gmra.mxu0 %v1111
        %v1529 = vpop.f32.mrf.mxu0
        %v1530 = vadd.f32 %v1441, %v1529
        %v1531 = vpop.f32.mrf.mxu0
        %v1532 = vadd.f32 %v1443, %v1531
        %1533 = vmatmul.bf16.gmra.mxu0 %v1115
        %v1534 = vpop.f32.mrf.mxu0
        %v1535 = vadd.f32 %v1446, %v1534
        %v1536 = vpop.f32.mrf.mxu0
        %v1537 = vadd.f32 %v1448, %v1536
        %1538 = vmatmul.bf16.gmra.mxu0 %v1119
        %v1539 = vpop.f32.mrf.mxu0
        %v1540 = vadd.f32 %v1451, %v1539
        %v1541 = vpop.f32.mrf.mxu0
        %v1542 = vadd.f32 %v1453, %v1541
        %1543 = vmatmul.bf16.gmra.mxu0 %v1123
        %v1544 = vpop.f32.mrf.mxu0
        %v1545 = vadd.f32 %v1456, %v1544
        %v1546 = vpop.f32.mrf.mxu0
        %v1547 = vadd.f32 %v1458, %v1546
        %1548 = vmatmul.bf16.gmra.mxu0 %v1127
        %v1549 = vpop.f32.mrf.mxu0
        %v1550 = vadd.f32 %v1461, %v1549
        %v1551 = vpop.f32.mrf.mxu0
        %v1552 = vadd.f32 %v1463, %v1551
        %1553 = vmatmul.bf16.gmra.mxu0 %v1131
        %v1554 = vpop.f32.mrf.mxu0
        %v1555 = vadd.f32 %v1466, %v1554
        %v1556 = vpop.f32.mrf.mxu0
        %v1557 = vadd.f32 %v1468, %v1556
        %1558 = vmatmul.bf16.gmra.mxu0 %v1135
        %v1559 = vpop.f32.mrf.mxu0
        %v1560 = vadd.f32 %v1471, %v1559
        %v1561 = vpop.f32.mrf.mxu0
        %v1562 = vadd.f32 %v1473, %v1561
        %1563 = vmatmul.bf16.gmra.mxu0 %v1139
        %v1564 = vpop.f32.mrf.mxu0
        %v1565 = vadd.f32 %v1476, %v1564
        %v1566 = vpop.f32.mrf.mxu0
        %v1567 = vadd.f32 %v1478, %v1566
        %1568 = vmatmul.bf16.gmra.mxu0 %v1143
        %v1569 = vpop.f32.mrf.mxu0
        %v1570 = vadd.f32 %v1481, %v1569
        %v1571 = vpop.f32.mrf.mxu0
        %v1572 = vadd.f32 %v1483, %v1571
        %1573 = vmatmul.bf16.gmra.mxu0 %v1147
        %v1574 = vpop.f32.mrf.mxu0
        %v1575 = vadd.f32 %v1486, %v1574
        %v1576 = vpop.f32.mrf.mxu0
        %v1577 = vadd.f32 %v1488, %v1576
        %1578 = vmatmul.bf16.gmra.mxu0 %v1151
        %v1579 = vpop.f32.mrf.mxu0
        %v1580 = vadd.f32 %v1491, %v1579
        %v1581 = vpop.f32.mrf.mxu0
        %v1582 = vadd.f32 %v1493, %v1581
        %1583 = vmatmul.bf16.gmra.mxu0 %v1155
        %v1584 = vpop.f32.mrf.mxu0
        %v1585 = vadd.f32 %v1496, %v1584
        %v1586 = vpop.f32.mrf.mxu0
        %v1587 = vadd.f32 %v1498, %v1586
        %1588 = vmatmul.bf16.gmra.mxu0 %v1159
        %v1589 = vpop.f32.mrf.mxu0
        %v1590 = vadd.f32 %v1501, %v1589
        %v1591 = vpop.f32.mrf.mxu0
        %v1592 = vadd.f32 %v1503, %v1591
        %1593 = vmatmul.bf16.gmra.mxu0 %v1163
        %v1594 = vpop.f32.mrf.mxu0
        %v1595 = vadd.f32 %v1506, %v1594
        %v1596 = vpop.f32.mrf.mxu0
        %v1597 = vadd.f32 %v1508, %v1596
        %1598 = vmatmul.bf16.gmra.mxu0 %v1167
        %v1599 = vpop.f32.mrf.mxu0
        %v1600 = vadd.f32 %v1511, %v1599
        %v1601 = vpop.f32.mrf.mxu0
        %v1602 = vadd.f32 %v1513, %v1601
        %1603 = vdwg.mxu0
        %1604 = vmatpush.bf16.msra.mxu0 %v1385
        %1605 = vmatpush.bf16.msra.mxu0 %v1384
        %1606 = vmatpush.bf16.msra.mxu0 %v1383
        %1607 = vmatpush.bf16.msra.mxu0 %v1382
        %1608 = vmatpush.bf16.msra.mxu0 %v1381
        %1609 = vmatpush.bf16.msra.mxu0 %v1380
        %1610 = vmatpush.bf16.msra.mxu0 %v1379
        %1611 = vmatpush.bf16.msra.mxu0 %v1378
        %1612 = vmatmul.bf16.gmra.mxu0 %v1108
        %v1613 = vpop.f32.mrf.mxu0
        %v1614 = vadd.f32 %v1525, %v1613
        %v1615 = vpop.f32.mrf.mxu0
        %v1616 = vadd.f32 %v1527, %v1615
        %1617 = vmatmul.bf16.gmra.mxu0 %v1112
        %v1618 = vpop.f32.mrf.mxu0
        %v1619 = vadd.f32 %v1530, %v1618
        %v1620 = vpop.f32.mrf.mxu0
        %v1621 = vadd.f32 %v1532, %v1620
        %1622 = vmatmul.bf16.gmra.mxu0 %v1116
        %v1623 = vpop.f32.mrf.mxu0
        %v1624 = vadd.f32 %v1535, %v1623
        %v1625 = vpop.f32.mrf.mxu0
        %v1626 = vadd.f32 %v1537, %v1625
        %1627 = vmatmul.bf16.gmra.mxu0 %v1120
        %v1628 = vpop.f32.mrf.mxu0
        %v1629 = vadd.f32 %v1540, %v1628
        %v1630 = vpop.f32.mrf.mxu0
        %v1631 = vadd.f32 %v1542, %v1630
        %1632 = vmatmul.bf16.gmra.mxu0 %v1124
        %v1633 = vpop.f32.mrf.mxu0
        %v1634 = vadd.f32 %v1545, %v1633
        %v1635 = vpop.f32.mrf.mxu0
        %v1636 = vadd.f32 %v1547, %v1635
        %1637 = vmatmul.bf16.gmra.mxu0 %v1128
        %v1638 = vpop.f32.mrf.mxu0
        %v1639 = vadd.f32 %v1550, %v1638
        %v1640 = vpop.f32.mrf.mxu0
        %v1641 = vadd.f32 %v1552, %v1640
        %1642 = vmatmul.bf16.gmra.mxu0 %v1132
        %v1643 = vpop.f32.mrf.mxu0
        %v1644 = vadd.f32 %v1555, %v1643
        %v1645 = vpop.f32.mrf.mxu0
        %v1646 = vadd.f32 %v1557, %v1645
        %1647 = vmatmul.bf16.gmra.mxu0 %v1136
        %v1648 = vpop.f32.mrf.mxu0
        %v1649 = vadd.f32 %v1560, %v1648
        %v1650 = vpop.f32.mrf.mxu0
        %v1651 = vadd.f32 %v1562, %v1650
        %1652 = vmatmul.bf16.gmra.mxu0 %v1140
        %v1653 = vpop.f32.mrf.mxu0
        %v1654 = vadd.f32 %v1565, %v1653
        %v1655 = vpop.f32.mrf.mxu0
        %v1656 = vadd.f32 %v1567, %v1655
        %1657 = vmatmul.bf16.gmra.mxu0 %v1144
        %v1658 = vpop.f32.mrf.mxu0
        %v1659 = vadd.f32 %v1570, %v1658
        %v1660 = vpop.f32.mrf.mxu0
        %v1661 = vadd.f32 %v1572, %v1660
        %1662 = vmatmul.bf16.gmra.mxu0 %v1148
        %v1663 = vpop.f32.mrf.mxu0
        %v1664 = vadd.f32 %v1575, %v1663
        %v1665 = vpop.f32.mrf.mxu0
        %v1666 = vadd.f32 %v1577, %v1665
        %1667 = vmatmul.bf16.gmra.mxu0 %v1152
        %v1668 = vpop.f32.mrf.mxu0
        %v1669 = vadd.f32 %v1580, %v1668
        %v1670 = vpop.f32.mrf.mxu0
        %v1671 = vadd.f32 %v1582, %v1670
        %1672 = vmatmul.bf16.gmra.mxu0 %v1156
        %v1673 = vpop.f32.mrf.mxu0
        %v1674 = vadd.f32 %v1585, %v1673
        %v1675 = vpop.f32.mrf.mxu0
        %v1676 = vadd.f32 %v1587, %v1675
        %1677 = vmatmul.bf16.gmra.mxu0 %v1160
        %v1678 = vpop.f32.mrf.mxu0
        %v1679 = vadd.f32 %v1590, %v1678
        %v1680 = vpop.f32.mrf.mxu0
        %v1681 = vadd.f32 %v1592, %v1680
        %1682 = vmatmul.bf16.gmra.mxu0 %v1164
        %v1683 = vpop.f32.mrf.mxu0
        %v1684 = vadd.f32 %v1595, %v1683
        %v1685 = vpop.f32.mrf.mxu0
        %v1686 = vadd.f32 %v1597, %v1685
        %1687 = vmatmul.bf16.gmra.mxu0 %v1168
        %v1688 = vpop.f32.mrf.mxu0
        %v1689 = vadd.f32 %v1600, %v1688
        %v1690 = vpop.f32.mrf.mxu0
        %v1691 = vadd.f32 %v1602, %v1690
        %1692 = vdwg.mxu0
        %1693 = vmatpush.bf16.msra.mxu0 %v1393
        %1694 = vmatpush.bf16.msra.mxu0 %v1392
        %1695 = vmatpush.bf16.msra.mxu0 %v1391
        %1696 = vmatpush.bf16.msra.mxu0 %v1390
        %1697 = vmatpush.bf16.msra.mxu0 %v1389
        %1698 = vmatpush.bf16.msra.mxu0 %v1388
        %1699 = vmatpush.bf16.msra.mxu0 %v1387
        %1700 = vmatpush.bf16.msra.mxu0 %v1386
        %1701 = vmatmul.bf16.gmra.mxu0 %v1109
        %v1702 = vpop.f32.mrf.mxu0
        %v1703 = vadd.f32 %v1614, %v1702
        %v1704 = vpop.f32.mrf.mxu0
        %v1705 = vadd.f32 %v1616, %v1704
        %1706 = vmatmul.bf16.gmra.mxu0 %v1113
        %v1707 = vpop.f32.mrf.mxu0
        %v1708 = vadd.f32 %v1619, %v1707
        %v1709 = vpop.f32.mrf.mxu0
        %v1710 = vadd.f32 %v1621, %v1709
        %1711 = vmatmul.bf16.gmra.mxu0 %v1117
        %v1712 = vpop.f32.mrf.mxu0
        %v1713 = vadd.f32 %v1624, %v1712
        %v1714 = vpop.f32.mrf.mxu0
        %v1715 = vadd.f32 %v1626, %v1714
        %1716 = vmatmul.bf16.gmra.mxu0 %v1121
        %v1717 = vpop.f32.mrf.mxu0
        %v1718 = vadd.f32 %v1629, %v1717
        %v1719 = vpop.f32.mrf.mxu0
        %v1720 = vadd.f32 %v1631, %v1719
        %1721 = vmatmul.bf16.gmra.mxu0 %v1125
        %v1722 = vpop.f32.mrf.mxu0
        %v1723 = vadd.f32 %v1634, %v1722
        %v1724 = vpop.f32.mrf.mxu0
        %v1725 = vadd.f32 %v1636, %v1724
        %1726 = vmatmul.bf16.gmra.mxu0 %v1129
        %v1727 = vpop.f32.mrf.mxu0
        %v1728 = vadd.f32 %v1639, %v1727
        %v1729 = vpop.f32.mrf.mxu0
        %v1730 = vadd.f32 %v1641, %v1729
        %1731 = vmatmul.bf16.gmra.mxu0 %v1133
        %v1732 = vpop.f32.mrf.mxu0
        %v1733 = vadd.f32 %v1644, %v1732
        %v1734 = vpop.f32.mrf.mxu0
        %v1735 = vadd.f32 %v1646, %v1734
        %1736 = vmatmul.bf16.gmra.mxu0 %v1137
        %v1737 = vpop.f32.mrf.mxu0
        %v1738 = vadd.f32 %v1649, %v1737
        %v1739 = vpop.f32.mrf.mxu0
        %v1740 = vadd.f32 %v1651, %v1739
        %1741 = vmatmul.bf16.gmra.mxu0 %v1141
        %v1742 = vpop.f32.mrf.mxu0
        %v1743 = vadd.f32 %v1654, %v1742
        %v1744 = vpop.f32.mrf.mxu0
        %v1745 = vadd.f32 %v1656, %v1744
        %1746 = vmatmul.bf16.gmra.mxu0 %v1145
        %v1747 = vpop.f32.mrf.mxu0
        %v1748 = vadd.f32 %v1659, %v1747
        %v1749 = vpop.f32.mrf.mxu0
        %v1750 = vadd.f32 %v1661, %v1749
        %1751 = vmatmul.bf16.gmra.mxu0 %v1149
        %v1752 = vpop.f32.mrf.mxu0
        %v1753 = vadd.f32 %v1664, %v1752
        %v1754 = vpop.f32.mrf.mxu0
        %v1755 = vadd.f32 %v1666, %v1754
        %1756 = vmatmul.bf16.gmra.mxu0 %v1153
        %v1757 = vpop.f32.mrf.mxu0
        %v1758 = vadd.f32 %v1669, %v1757
        %v1759 = vpop.f32.mrf.mxu0
        %v1760 = vadd.f32 %v1671, %v1759
        %1761 = vmatmul.bf16.gmra.mxu0 %v1157
        %v1762 = vpop.f32.mrf.mxu0
        %v1763 = vadd.f32 %v1674, %v1762
        %v1764 = vpop.f32.mrf.mxu0
        %v1765 = vadd.f32 %v1676, %v1764
        %1766 = vmatmul.bf16.gmra.mxu0 %v1161
        %v1767 = vpop.f32.mrf.mxu0
        %v1768 = vadd.f32 %v1679, %v1767
        %v1769 = vpop.f32.mrf.mxu0
        %v1770 = vadd.f32 %v1681, %v1769
        %1771 = vmatmul.bf16.gmra.mxu0 %v1165
        %v1772 = vpop.f32.mrf.mxu0
        %v1773 = vadd.f32 %v1684, %v1772
        %v1774 = vpop.f32.mrf.mxu0
        %v1775 = vadd.f32 %v1686, %v1774
        %1776 = vmatmul.bf16.gmra.mxu0 %v1169
        %v1777 = vpop.f32.mrf.mxu0
        %v1778 = vadd.f32 %v1689, %v1777
        %v1779 = vpop.f32.mrf.mxu0
        %v1780 = vadd.f32 %v1691, %v1779
        %1781 = vdwg.mxu0
        %v1782 = vadd.f32 %v818, %v1703
        %v1783 = vadd.f32 %v819, %v1705
        %v1784 = vadd.f32 %v820, %v1708
        %v1785 = vadd.f32 %v821, %v1710
        %v1786 = vadd.f32 %v822, %v1713
        %v1787 = vadd.f32 %v823, %v1715
        %v1788 = vadd.f32 %v824, %v1718
        %v1789 = vadd.f32 %v825, %v1720
        %v1790 = vadd.f32 %v826, %v1723
        %v1791 = vadd.f32 %v827, %v1725
        %v1792 = vadd.f32 %v828, %v1728
        %v1793 = vadd.f32 %v829, %v1730
        %v1794 = vadd.f32 %v830, %v1733
        %v1795 = vadd.f32 %v831, %v1735
        %v1796 = vadd.f32 %v832, %v1738
        %v1797 = vadd.f32 %v833, %v1740
        %v1798 = vadd.f32 %v834, %v1743
        %v1799 = vadd.f32 %v835, %v1745
        %v1800 = vadd.f32 %v836, %v1748
        %v1801 = vadd.f32 %v837, %v1750
        %v1802 = vadd.f32 %v838, %v1753
        %v1803 = vadd.f32 %v839, %v1755
        %v1804 = vadd.f32 %v840, %v1758
        %v1805 = vadd.f32 %v841, %v1760
        %v1806 = vadd.f32 %v842, %v1763
        %v1807 = vadd.f32 %v843, %v1765
        %v1808 = vadd.f32 %v844, %v1768
        %v1809 = vadd.f32 %v845, %v1770
        %v1810 = vadd.f32 %v846, %v1773
        %v1811 = vadd.f32 %v847, %v1775
        %v1812 = vadd.f32 %v848, %v1778
        %v1813 = vadd.f32 %v849, %v1780
        %1814 = vst [vmem:[#allocation2] sm:$0xff] %v1782
        %1815 = vst [vmem:[#allocation2 + $0x8] sm:$0xff] %v1783
        %1816 = vst [vmem:[#allocation2 + $0x10] sm:$0xff] %v1784
        %1817 = vst [vmem:[#allocation2 + $0x18] sm:$0xff] %v1785
        %1818 = vst [vmem:[#allocation2 + $0x20] sm:$0xff] %v1786
        %1819 = vst [vmem:[#allocation2 + $0x28] sm:$0xff] %v1787
        %1820 = vst [vmem:[#allocation2 + $0x30] sm:$0xff] %v1788
        %1821 = vst [vmem:[#allocation2 + $0x38] sm:$0xff] %v1789
        %1822 = vst [vmem:[#allocation2 + $0x40] sm:$0xff] %v1790
        %1823 = vst [vmem:[#allocation2 + $0x48] sm:$0xff] %v1791
        %1824 = vst [vmem:[#allocation2 + $0x50] sm:$0xff] %v1792
        %1825 = vst [vmem:[#allocation2 + $0x58] sm:$0xff] %v1793
        %1826 = vst [vmem:[#allocation2 + $0x60] sm:$0xff] %v1794
        %1827 = vst [vmem:[#allocation2 + $0x68] sm:$0xff] %v1795
        %1828 = vst [vmem:[#allocation2 + $0x70] sm:$0xff] %v1796
        %1829 = vst [vmem:[#allocation2 + $0x78] sm:$0xff] %v1797
        %1830 = vst [vmem:[#allocation2 + $0x80] sm:$0xff] %v1798
        %1831 = vst [vmem:[#allocation2 + $0x88] sm:$0xff] %v1799
        %1832 = vst [vmem:[#allocation2 + $0x90] sm:$0xff] %v1800
        %1833 = vst [vmem:[#allocation2 + $0x98] sm:$0xff] %v1801
        %1834 = vst [vmem:[#allocation2 + $0xa0] sm:$0xff] %v1802
        %1835 = vst [vmem:[#allocation2 + $0xa8] sm:$0xff] %v1803
        %1836 = vst [vmem:[#allocation2 + $0xb0] sm:$0xff] %v1804
        %1837 = vst [vmem:[#allocation2 + $0xb8] sm:$0xff] %v1805
        %1838 = vst [vmem:[#allocation2 + $0xc0] sm:$0xff] %v1806
        %1839 = vst [vmem:[#allocation2 + $0xc8] sm:$0xff] %v1807
        %1840 = vst [vmem:[#allocation2 + $0xd0] sm:$0xff] %v1808
        %1841 = vst [vmem:[#allocation2 + $0xd8] sm:$0xff] %v1809
        %1842 = vst [vmem:[#allocation2 + $0xe0] sm:$0xff] %v1810
        %1843 = vst [vmem:[#allocation2 + $0xe8] sm:$0xff] %v1811
        %1844 = vst [vmem:[#allocation2 + $0xf0] sm:$0xff] %v1812
        %1845 = vst [vmem:[#allocation2 + $0xf8] sm:$0xff] %v1813
      $region56: #{_rgcn_pallas.1} parent=43 // pred_fallthru
        _
      // Predicated region
      $region57: #{_rgcn_pallas.1} parent=43 // pred_check
        %p1846 = pneg %p381
      $region58: #{_rgcn_pallas.1} parent=43 // pred_check_branch
        %1848 = sbr.rel (%p1846) target = $region60
      $region59: #{_rgcn_pallas.1} parent=43 // pred_region
        %v1849 = vld [vmem:[#allocation2] sm:$0xff]
        %v1850 = vld [vmem:[#allocation2 + $0x8] sm:$0xff]
        %v1851 = vld [vmem:[#allocation2 + $0x10] sm:$0xff]
        %v1852 = vld [vmem:[#allocation2 + $0x18] sm:$0xff]
        %v1853 = vld [vmem:[#allocation2 + $0x20] sm:$0xff]
        %v1854 = vld [vmem:[#allocation2 + $0x28] sm:$0xff]
        %v1855 = vld [vmem:[#allocation2 + $0x30] sm:$0xff]
        %v1856 = vld [vmem:[#allocation2 + $0x38] sm:$0xff]
        %v1857 = vld [vmem:[#allocation2 + $0x40] sm:$0xff]
        %v1858 = vld [vmem:[#allocation2 + $0x48] sm:$0xff]
        %v1859 = vld [vmem:[#allocation2 + $0x50] sm:$0xff]
        %v1860 = vld [vmem:[#allocation2 + $0x58] sm:$0xff]
        %v1861 = vld [vmem:[#allocation2 + $0x60] sm:$0xff]
        %v1862 = vld [vmem:[#allocation2 + $0x68] sm:$0xff]
        %v1863 = vld [vmem:[#allocation2 + $0x70] sm:$0xff]
        %v1864 = vld [vmem:[#allocation2 + $0x78] sm:$0xff]
        %v1865 = vld [vmem:[#allocation2 + $0x80] sm:$0xff]
        %v1866 = vld [vmem:[#allocation2 + $0x88] sm:$0xff]
        %v1867 = vld [vmem:[#allocation2 + $0x90] sm:$0xff]
        %v1868 = vld [vmem:[#allocation2 + $0x98] sm:$0xff]
        %v1869 = vld [vmem:[#allocation2 + $0xa0] sm:$0xff]
        %v1870 = vld [vmem:[#allocation2 + $0xa8] sm:$0xff]
        %v1871 = vld [vmem:[#allocation2 + $0xb0] sm:$0xff]
        %v1872 = vld [vmem:[#allocation2 + $0xb8] sm:$0xff]
        %v1873 = vld [vmem:[#allocation2 + $0xc0] sm:$0xff]
        %v1874 = vld [vmem:[#allocation2 + $0xc8] sm:$0xff]
        %v1875 = vld [vmem:[#allocation2 + $0xd0] sm:$0xff]
        %v1876 = vld [vmem:[#allocation2 + $0xd8] sm:$0xff]
        %v1877 = vld [vmem:[#allocation2 + $0xe0] sm:$0xff]
        %v1878 = vld [vmem:[#allocation2 + $0xe8] sm:$0xff]
        %v1879 = vld [vmem:[#allocation2 + $0xf0] sm:$0xff]
        %v1880 = vld [vmem:[#allocation2 + $0xf8] sm:$0xff]
        %v1881 = vld [vmem:[%s369] sm:$0xff]
        %v1882 = vld [vmem:[%s369 + $0x8] sm:$0xff]
        %v1883 = vld [vmem:[%s369 + $0x10] sm:$0xff]
        %v1884 = vld [vmem:[%s369 + $0x18] sm:$0xff]
        %v1885 = vld [vmem:[%s369 + $0x20] sm:$0xff]
        %v1886 = vld [vmem:[%s369 + $0x28] sm:$0xff]
        %v1887 = vld [vmem:[%s369 + $0x30] sm:$0xff]
        %v1888 = vld [vmem:[%s369 + $0x38] sm:$0xff]
        %v1889 = vld [vmem:[%s369 + $0x40] sm:$0xff]
        %v1890 = vld [vmem:[%s369 + $0x48] sm:$0xff]
        %v1891 = vld [vmem:[%s369 + $0x50] sm:$0xff]
        %v1892 = vld [vmem:[%s369 + $0x58] sm:$0xff]
        %v1893 = vld [vmem:[%s369 + $0x60] sm:$0xff]
        %v1894 = vld [vmem:[%s369 + $0x68] sm:$0xff]
        %v1895 = vld [vmem:[%s369 + $0x70] sm:$0xff]
        %v1896 = vld [vmem:[%s369 + $0x78] sm:$0xff]
        %v1897 = vld [vmem:[%s369 + $0x80] sm:$0xff]
        %v1898 = vld [vmem:[%s369 + $0x88] sm:$0xff]
        %v1899 = vld [vmem:[%s369 + $0x90] sm:$0xff]
        %v1900 = vld [vmem:[%s369 + $0x98] sm:$0xff]
        %v1901 = vld [vmem:[%s369 + $0xa0] sm:$0xff]
        %v1902 = vld [vmem:[%s369 + $0xa8] sm:$0xff]
        %v1903 = vld [vmem:[%s369 + $0xb0] sm:$0xff]
        %v1904 = vld [vmem:[%s369 + $0xb8] sm:$0xff]
        %v1905 = vld [vmem:[%s369 + $0xc0] sm:$0xff]
        %v1906 = vld [vmem:[%s369 + $0xc8] sm:$0xff]
        %v1907 = vld [vmem:[%s369 + $0xd0] sm:$0xff]
        %v1908 = vld [vmem:[%s369 + $0xd8] sm:$0xff]
        %v1909 = vld [vmem:[%s369 + $0xe0] sm:$0xff]
        %v1910 = vld [vmem:[%s369 + $0xe8] sm:$0xff]
        %v1911 = vld [vmem:[%s369 + $0xf0] sm:$0xff]
        %v1912 = vld [vmem:[%s369 + $0xf8] sm:$0xff]
        %1914 = vset.pattern.permute.xlu0 0
        %1915 = vperm.xlu0 %1914, %v1881
        %v1916 = vpop.permute.xlu0 %1915
        %1919 = vset.pattern.permute.xlu0 0
        %1920 = vperm.xlu0 %1919, %v1882
        %v1921 = vpop.permute.xlu0 %1920
        %1924 = vset.pattern.permute.xlu0 0
        %1925 = vperm.xlu0 %1924, %v1883
        %v1926 = vpop.permute.xlu0 %1925
        %1929 = vset.pattern.permute.xlu0 0
        %1930 = vperm.xlu0 %1929, %v1884
        %v1931 = vpop.permute.xlu0 %1930
        %1934 = vset.pattern.permute.xlu0 0
        %1935 = vperm.xlu0 %1934, %v1885
        %v1936 = vpop.permute.xlu0 %1935
        %1939 = vset.pattern.permute.xlu0 0
        %1940 = vperm.xlu0 %1939, %v1886
        %v1941 = vpop.permute.xlu0 %1940
        %1944 = vset.pattern.permute.xlu0 0
        %1945 = vperm.xlu0 %1944, %v1887
        %v1946 = vpop.permute.xlu0 %1945
        %1949 = vset.pattern.permute.xlu0 0
        %1950 = vperm.xlu0 %1949, %v1888
        %v1951 = vpop.permute.xlu0 %1950
        %1954 = vset.pattern.permute.xlu0 0
        %1955 = vperm.xlu0 %1954, %v1889
        %v1956 = vpop.permute.xlu0 %1955
        %1959 = vset.pattern.permute.xlu0 0
        %1960 = vperm.xlu0 %1959, %v1890
        %v1961 = vpop.permute.xlu0 %1960
        %1964 = vset.pattern.permute.xlu0 0
        %1965 = vperm.xlu0 %1964, %v1891
        %v1966 = vpop.permute.xlu0 %1965
        %1969 = vset.pattern.permute.xlu0 0
        %1970 = vperm.xlu0 %1969, %v1892
        %v1971 = vpop.permute.xlu0 %1970
        %1974 = vset.pattern.permute.xlu0 0
        %1975 = vperm.xlu0 %1974, %v1893
        %v1976 = vpop.permute.xlu0 %1975
        %1979 = vset.pattern.permute.xlu0 0
        %1980 = vperm.xlu0 %1979, %v1894
        %v1981 = vpop.permute.xlu0 %1980
        %1984 = vset.pattern.permute.xlu0 0
        %1985 = vperm.xlu0 %1984, %v1895
        %v1986 = vpop.permute.xlu0 %1985
        %1989 = vset.pattern.permute.xlu0 0
        %1990 = vperm.xlu0 %1989, %v1896
        %v1991 = vpop.permute.xlu0 %1990
        %1994 = vset.pattern.permute.xlu0 0
        %1995 = vperm.xlu0 %1994, %v1897
        %v1996 = vpop.permute.xlu0 %1995
        %1999 = vset.pattern.permute.xlu0 0
        %2000 = vperm.xlu0 %1999, %v1898
        %v2001 = vpop.permute.xlu0 %2000
        %2004 = vset.pattern.permute.xlu0 0
        %2005 = vperm.xlu0 %2004, %v1899
        %v2006 = vpop.permute.xlu0 %2005
        %2009 = vset.pattern.permute.xlu0 0
        %2010 = vperm.xlu0 %2009, %v1900
        %v2011 = vpop.permute.xlu0 %2010
        %2014 = vset.pattern.permute.xlu0 0
        %2015 = vperm.xlu0 %2014, %v1901
        %v2016 = vpop.permute.xlu0 %2015
        %2019 = vset.pattern.permute.xlu0 0
        %2020 = vperm.xlu0 %2019, %v1902
        %v2021 = vpop.permute.xlu0 %2020
        %2024 = vset.pattern.permute.xlu0 0
        %2025 = vperm.xlu0 %2024, %v1903
        %v2026 = vpop.permute.xlu0 %2025
        %2029 = vset.pattern.permute.xlu0 0
        %2030 = vperm.xlu0 %2029, %v1904
        %v2031 = vpop.permute.xlu0 %2030
        %2034 = vset.pattern.permute.xlu0 0
        %2035 = vperm.xlu0 %2034, %v1905
        %v2036 = vpop.permute.xlu0 %2035
        %2039 = vset.pattern.permute.xlu0 0
        %2040 = vperm.xlu0 %2039, %v1906
        %v2041 = vpop.permute.xlu0 %2040
        %2044 = vset.pattern.permute.xlu0 0
        %2045 = vperm.xlu0 %2044, %v1907
        %v2046 = vpop.permute.xlu0 %2045
        %2049 = vset.pattern.permute.xlu0 0
        %2050 = vperm.xlu0 %2049, %v1908
        %v2051 = vpop.permute.xlu0 %2050
        %2054 = vset.pattern.permute.xlu0 0
        %2055 = vperm.xlu0 %2054, %v1909
        %v2056 = vpop.permute.xlu0 %2055
        %2059 = vset.pattern.permute.xlu0 0
        %2060 = vperm.xlu0 %2059, %v1910
        %v2061 = vpop.permute.xlu0 %2060
        %2064 = vset.pattern.permute.xlu0 0
        %2065 = vperm.xlu0 %2064, %v1911
        %v2066 = vpop.permute.xlu0 %2065
        %2069 = vset.pattern.permute.xlu0 0
        %2070 = vperm.xlu0 %2069, %v1912
        %v2071 = vpop.permute.xlu0 %2070
        %v2073 = vmul.f32 %v1849, %v1916
        %v2074 = vmul.f32 %v1850, %v1921
        %v2075 = vmul.f32 %v1851, %v1926
        %v2076 = vmul.f32 %v1852, %v1931
        %v2077 = vmul.f32 %v1853, %v1936
        %v2078 = vmul.f32 %v1854, %v1941
        %v2079 = vmul.f32 %v1855, %v1946
        %v2080 = vmul.f32 %v1856, %v1951
        %v2081 = vmul.f32 %v1857, %v1956
        %v2082 = vmul.f32 %v1858, %v1961
        %v2083 = vmul.f32 %v1859, %v1966
        %v2084 = vmul.f32 %v1860, %v1971
        %v2085 = vmul.f32 %v1861, %v1976
        %v2086 = vmul.f32 %v1862, %v1981
        %v2087 = vmul.f32 %v1863, %v1986
        %v2088 = vmul.f32 %v1864, %v1991
        %v2089 = vmul.f32 %v1865, %v1996
        %v2090 = vmul.f32 %v1866, %v2001
        %v2091 = vmul.f32 %v1867, %v2006
        %v2092 = vmul.f32 %v1868, %v2011
        %v2093 = vmul.f32 %v1869, %v2016
        %v2094 = vmul.f32 %v1870, %v2021
        %v2095 = vmul.f32 %v1871, %v2026
        %v2096 = vmul.f32 %v1872, %v2031
        %v2097 = vmul.f32 %v1873, %v2036
        %v2098 = vmul.f32 %v1874, %v2041
        %v2099 = vmul.f32 %v1875, %v2046
        %v2100 = vmul.f32 %v1876, %v2051
        %v2101 = vmul.f32 %v1877, %v2056
        %v2102 = vmul.f32 %v1878, %v2061
        %v2103 = vmul.f32 %v1879, %v2066
        %v2104 = vmul.f32 %v1880, %v2071
        %v2105 = vpack.c.bf16 %v2074, %v2073
        %v2106 = vpack.c.bf16 %v2076, %v2075
        %v2107 = vpack.c.bf16 %v2078, %v2077
        %v2108 = vpack.c.bf16 %v2080, %v2079
        %v2109 = vpack.c.bf16 %v2082, %v2081
        %v2110 = vpack.c.bf16 %v2084, %v2083
        %v2111 = vpack.c.bf16 %v2086, %v2085
        %v2112 = vpack.c.bf16 %v2088, %v2087
        %v2113 = vpack.c.bf16 %v2090, %v2089
        %v2114 = vpack.c.bf16 %v2092, %v2091
        %v2115 = vpack.c.bf16 %v2094, %v2093
        %v2116 = vpack.c.bf16 %v2096, %v2095
        %v2117 = vpack.c.bf16 %v2098, %v2097
        %v2118 = vpack.c.bf16 %v2100, %v2099
        %v2119 = vpack.c.bf16 %v2102, %v2101
        %v2120 = vpack.c.bf16 %v2104, %v2103
        %v2121 = vld [vmem:[%s375] sm:$0xff]
        %v2122 = vld [vmem:[%s375 + $0x8] sm:$0xff]
        %v2123 = vld [vmem:[%s375 + $0x10] sm:$0xff]
        %v2124 = vld [vmem:[%s375 + $0x18] sm:$0xff]
        %v2125 = vld [vmem:[%s375 + $0x20] sm:$0xff]
        %v2126 = vld [vmem:[%s375 + $0x28] sm:$0xff]
        %v2127 = vld [vmem:[%s375 + $0x30] sm:$0xff]
        %v2128 = vld [vmem:[%s375 + $0x38] sm:$0xff]
        %v2129 = vld [vmem:[%s375 + $0x40] sm:$0xff]
        %v2130 = vld [vmem:[%s375 + $0x48] sm:$0xff]
        %v2131 = vld [vmem:[%s375 + $0x50] sm:$0xff]
        %v2132 = vld [vmem:[%s375 + $0x58] sm:$0xff]
        %v2133 = vld [vmem:[%s375 + $0x60] sm:$0xff]
        %v2134 = vld [vmem:[%s375 + $0x68] sm:$0xff]
        %v2135 = vld [vmem:[%s375 + $0x70] sm:$0xff]
        %v2136 = vld [vmem:[%s375 + $0x78] sm:$0xff]
        %v2137 = vld [vmem:[%s375 + $0x80] sm:$0xff]
        %v2138 = vld [vmem:[%s375 + $0x88] sm:$0xff]
        %v2139 = vld [vmem:[%s375 + $0x90] sm:$0xff]
        %v2140 = vld [vmem:[%s375 + $0x98] sm:$0xff]
        %v2141 = vld [vmem:[%s375 + $0xa0] sm:$0xff]
        %v2142 = vld [vmem:[%s375 + $0xa8] sm:$0xff]
        %v2143 = vld [vmem:[%s375 + $0xb0] sm:$0xff]
        %v2144 = vld [vmem:[%s375 + $0xb8] sm:$0xff]
        %v2145 = vld [vmem:[%s375 + $0xc0] sm:$0xff]
        %v2146 = vld [vmem:[%s375 + $0xc8] sm:$0xff]
        %v2147 = vld [vmem:[%s375 + $0xd0] sm:$0xff]
        %v2148 = vld [vmem:[%s375 + $0xd8] sm:$0xff]
        %v2149 = vld [vmem:[%s375 + $0xe0] sm:$0xff]
        %v2150 = vld [vmem:[%s375 + $0xe8] sm:$0xff]
        %v2151 = vld [vmem:[%s375 + $0xf0] sm:$0xff]
        %v2152 = vld [vmem:[%s375 + $0xf8] sm:$0xff]
        %v2153 = vld [vmem:[%s360] sm:$0xf]
        %v2154 = vld [vmem:[%s360 + $0x4] sm:$0xf]
        %v2155 = vld [vmem:[%s360 + $0x8] sm:$0xf]
        %v2156 = vld [vmem:[%s360 + $0xc] sm:$0xf]
        %v2157 = vld [vmem:[%s360 + $0x10] sm:$0xf]
        %v2158 = vld [vmem:[%s360 + $0x14] sm:$0xf]
        %v2159 = vld [vmem:[%s360 + $0x18] sm:$0xf]
        %v2160 = vld [vmem:[%s360 + $0x1c] sm:$0xf]
        %v2161 = vld [vmem:[%s360 + $0x20] sm:$0xf]
        %v2162 = vld [vmem:[%s360 + $0x24] sm:$0xf]
        %v2163 = vld [vmem:[%s360 + $0x28] sm:$0xf]
        %v2164 = vld [vmem:[%s360 + $0x2c] sm:$0xf]
        %v2165 = vld [vmem:[%s360 + $0x30] sm:$0xf]
        %v2166 = vld [vmem:[%s360 + $0x34] sm:$0xf]
        %v2167 = vld [vmem:[%s360 + $0x38] sm:$0xf]
        %v2168 = vld [vmem:[%s360 + $0x3c] sm:$0xf]
        %v2185 = vunpack.c.l.b16 %v2153
        %v2186 = vunpack.c.l.b16 %v2154
        %v2187 = vunpack.c.l.b16 %v2155
        %v2188 = vunpack.c.l.b16 %v2156
        %v2189 = vunpack.c.l.b16 %v2157
        %v2190 = vunpack.c.l.b16 %v2158
        %v2191 = vunpack.c.l.b16 %v2159
        %v2192 = vunpack.c.l.b16 %v2160
        %v2193 = vunpack.c.l.b16 %v2161
        %v2194 = vunpack.c.l.b16 %v2162
        %v2195 = vunpack.c.l.b16 %v2163
        %v2196 = vunpack.c.l.b16 %v2164
        %v2197 = vunpack.c.l.b16 %v2165
        %v2198 = vunpack.c.l.b16 %v2166
        %v2199 = vunpack.c.l.b16 %v2167
        %v2200 = vunpack.c.l.b16 %v2168
        %v2201 = vpack.c.b16 %v2186, %v2185
        %v2202 = vpack.c.b16 %v2188, %v2187
        %v2203 = vpack.c.b16 %v2190, %v2189
        %v2204 = vpack.c.b16 %v2192, %v2191
        %v2205 = vpack.c.b16 %v2194, %v2193
        %v2206 = vpack.c.b16 %v2196, %v2195
        %v2207 = vpack.c.b16 %v2198, %v2197
        %v2208 = vpack.c.b16 %v2200, %v2199
        %2217 = vmatpush.bf16.msra.mxu0 %v2208
        %2218 = vmatpush.bf16.msra.mxu0 %v2207
        %2219 = vmatpush.bf16.msra.mxu0 %v2206
        %2220 = vmatpush.bf16.msra.mxu0 %v2205
        %2221 = vmatpush.bf16.msra.mxu0 %v2204
        %2222 = vmatpush.bf16.msra.mxu0 %v2203
        %2223 = vmatpush.bf16.msra.mxu0 %v2202
        %2224 = vmatpush.bf16.msra.mxu0 %v2201
        %2225 = vmatmul.bf16.gmra.mxu0 %v2105
        %v2226 = vpop.f32.mrf.mxu0
        %v2227 = vadd.f32 0.0, %v2226
        %v2228 = vpop.f32.mrf.mxu0
        %v2229 = vadd.f32 0.0, %v2228
        %2230 = vmatmul.bf16.gmra.mxu0 %v2106
        %v2231 = vpop.f32.mrf.mxu0
        %v2232 = vadd.f32 0.0, %v2231
        %v2233 = vpop.f32.mrf.mxu0
        %v2234 = vadd.f32 0.0, %v2233
        %2235 = vmatmul.bf16.gmra.mxu0 %v2107
        %v2236 = vpop.f32.mrf.mxu0
        %v2237 = vadd.f32 0.0, %v2236
        %v2238 = vpop.f32.mrf.mxu0
        %v2239 = vadd.f32 0.0, %v2238
        %2240 = vmatmul.bf16.gmra.mxu0 %v2108
        %v2241 = vpop.f32.mrf.mxu0
        %v2242 = vadd.f32 0.0, %v2241
        %v2243 = vpop.f32.mrf.mxu0
        %v2244 = vadd.f32 0.0, %v2243
        %2245 = vmatmul.bf16.gmra.mxu0 %v2109
        %v2246 = vpop.f32.mrf.mxu0
        %v2247 = vadd.f32 0.0, %v2246
        %v2248 = vpop.f32.mrf.mxu0
        %v2249 = vadd.f32 0.0, %v2248
        %2250 = vmatmul.bf16.gmra.mxu0 %v2110
        %v2251 = vpop.f32.mrf.mxu0
        %v2252 = vadd.f32 0.0, %v2251
        %v2253 = vpop.f32.mrf.mxu0
        %v2254 = vadd.f32 0.0, %v2253
        %2255 = vmatmul.bf16.gmra.mxu0 %v2111
        %v2256 = vpop.f32.mrf.mxu0
        %v2257 = vadd.f32 0.0, %v2256
        %v2258 = vpop.f32.mrf.mxu0
        %v2259 = vadd.f32 0.0, %v2258
        %2260 = vmatmul.bf16.gmra.mxu0 %v2112
        %v2261 = vpop.f32.mrf.mxu0
        %v2262 = vadd.f32 0.0, %v2261
        %v2263 = vpop.f32.mrf.mxu0
        %v2264 = vadd.f32 0.0, %v2263
        %2265 = vmatmul.bf16.gmra.mxu0 %v2113
        %v2266 = vpop.f32.mrf.mxu0
        %v2267 = vadd.f32 0.0, %v2266
        %v2268 = vpop.f32.mrf.mxu0
        %v2269 = vadd.f32 0.0, %v2268
        %2270 = vmatmul.bf16.gmra.mxu0 %v2114
        %v2271 = vpop.f32.mrf.mxu0
        %v2272 = vadd.f32 0.0, %v2271
        %v2273 = vpop.f32.mrf.mxu0
        %v2274 = vadd.f32 0.0, %v2273
        %2275 = vmatmul.bf16.gmra.mxu0 %v2115
        %v2276 = vpop.f32.mrf.mxu0
        %v2277 = vadd.f32 0.0, %v2276
        %v2278 = vpop.f32.mrf.mxu0
        %v2279 = vadd.f32 0.0, %v2278
        %2280 = vmatmul.bf16.gmra.mxu0 %v2116
        %v2281 = vpop.f32.mrf.mxu0
        %v2282 = vadd.f32 0.0, %v2281
        %v2283 = vpop.f32.mrf.mxu0
        %v2284 = vadd.f32 0.0, %v2283
        %2285 = vmatmul.bf16.gmra.mxu0 %v2117
        %v2286 = vpop.f32.mrf.mxu0
        %v2287 = vadd.f32 0.0, %v2286
        %v2288 = vpop.f32.mrf.mxu0
        %v2289 = vadd.f32 0.0, %v2288
        %2290 = vmatmul.bf16.gmra.mxu0 %v2118
        %v2291 = vpop.f32.mrf.mxu0
        %v2292 = vadd.f32 0.0, %v2291
        %v2293 = vpop.f32.mrf.mxu0
        %v2294 = vadd.f32 0.0, %v2293
        %2295 = vmatmul.bf16.gmra.mxu0 %v2119
        %v2296 = vpop.f32.mrf.mxu0
        %v2297 = vadd.f32 0.0, %v2296
        %v2298 = vpop.f32.mrf.mxu0
        %v2299 = vadd.f32 0.0, %v2298
        %2300 = vmatmul.bf16.gmra.mxu0 %v2120
        %v2301 = vpop.f32.mrf.mxu0
        %v2302 = vadd.f32 0.0, %v2301
        %v2303 = vpop.f32.mrf.mxu0
        %v2304 = vadd.f32 0.0, %v2303
        %2305 = vdwg.mxu0
        %v2306 = vadd.f32 %v2121, %v2227
        %v2307 = vadd.f32 %v2122, %v2229
        %v2308 = vadd.f32 %v2123, %v2232
        %v2309 = vadd.f32 %v2124, %v2234
        %v2310 = vadd.f32 %v2125, %v2237
        %v2311 = vadd.f32 %v2126, %v2239
        %v2312 = vadd.f32 %v2127, %v2242
        %v2313 = vadd.f32 %v2128, %v2244
        %v2314 = vadd.f32 %v2129, %v2247
        %v2315 = vadd.f32 %v2130, %v2249
        %v2316 = vadd.f32 %v2131, %v2252
        %v2317 = vadd.f32 %v2132, %v2254
        %v2318 = vadd.f32 %v2133, %v2257
        %v2319 = vadd.f32 %v2134, %v2259
        %v2320 = vadd.f32 %v2135, %v2262
        %v2321 = vadd.f32 %v2136, %v2264
        %v2322 = vadd.f32 %v2137, %v2267
        %v2323 = vadd.f32 %v2138, %v2269
        %v2324 = vadd.f32 %v2139, %v2272
        %v2325 = vadd.f32 %v2140, %v2274
        %v2326 = vadd.f32 %v2141, %v2277
        %v2327 = vadd.f32 %v2142, %v2279
        %v2328 = vadd.f32 %v2143, %v2282
        %v2329 = vadd.f32 %v2144, %v2284
        %v2330 = vadd.f32 %v2145, %v2287
        %v2331 = vadd.f32 %v2146, %v2289
        %v2332 = vadd.f32 %v2147, %v2292
        %v2333 = vadd.f32 %v2148, %v2294
        %v2334 = vadd.f32 %v2149, %v2297
        %v2335 = vadd.f32 %v2150, %v2299
        %v2336 = vadd.f32 %v2151, %v2302
        %v2337 = vadd.f32 %v2152, %v2304
        %2338 = vst [vmem:[%s375] sm:$0xff] %v2306
        %2339 = vst [vmem:[%s375 + $0x8] sm:$0xff] %v2307
        %2340 = vst [vmem:[%s375 + $0x10] sm:$0xff] %v2308
        %2341 = vst [vmem:[%s375 + $0x18] sm:$0xff] %v2309
        %2342 = vst [vmem:[%s375 + $0x20] sm:$0xff] %v2310
        %2343 = vst [vmem:[%s375 + $0x28] sm:$0xff] %v2311
        %2344 = vst [vmem:[%s375 + $0x30] sm:$0xff] %v2312
        %2345 = vst [vmem:[%s375 + $0x38] sm:$0xff] %v2313
        %2346 = vst [vmem:[%s375 + $0x40] sm:$0xff] %v2314
        %2347 = vst [vmem:[%s375 + $0x48] sm:$0xff] %v2315
        %2348 = vst [vmem:[%s375 + $0x50] sm:$0xff] %v2316
        %2349 = vst [vmem:[%s375 + $0x58] sm:$0xff] %v2317
        %2350 = vst [vmem:[%s375 + $0x60] sm:$0xff] %v2318
        %2351 = vst [vmem:[%s375 + $0x68] sm:$0xff] %v2319
        %2352 = vst [vmem:[%s375 + $0x70] sm:$0xff] %v2320
        %2353 = vst [vmem:[%s375 + $0x78] sm:$0xff] %v2321
        %2354 = vst [vmem:[%s375 + $0x80] sm:$0xff] %v2322
        %2355 = vst [vmem:[%s375 + $0x88] sm:$0xff] %v2323
        %2356 = vst [vmem:[%s375 + $0x90] sm:$0xff] %v2324
        %2357 = vst [vmem:[%s375 + $0x98] sm:$0xff] %v2325
        %2358 = vst [vmem:[%s375 + $0xa0] sm:$0xff] %v2326
        %2359 = vst [vmem:[%s375 + $0xa8] sm:$0xff] %v2327
        %2360 = vst [vmem:[%s375 + $0xb0] sm:$0xff] %v2328
        %2361 = vst [vmem:[%s375 + $0xb8] sm:$0xff] %v2329
        %2362 = vst [vmem:[%s375 + $0xc0] sm:$0xff] %v2330
        %2363 = vst [vmem:[%s375 + $0xc8] sm:$0xff] %v2331
        %2364 = vst [vmem:[%s375 + $0xd0] sm:$0xff] %v2332
        %2365 = vst [vmem:[%s375 + $0xd8] sm:$0xff] %v2333
        %2366 = vst [vmem:[%s375 + $0xe0] sm:$0xff] %v2334
        %2367 = vst [vmem:[%s375 + $0xe8] sm:$0xff] %v2335
        %2368 = vst [vmem:[%s375 + $0xf0] sm:$0xff] %v2336
        %2369 = vst [vmem:[%s375 + $0xf8] sm:$0xff] %v2337
      $region60: #{_rgcn_pallas.1} parent=43 // pred_fallthru
        _
      %p2370 = scmp.eq.s32.totalorder %s44, 2
      %p2371 = pnand %p2370, %p381
      %p2372 = pneg %p2371
      // Predicated region
      $region61: #{_rgcn_pallas.1} parent=43 // pred_check
        _
      $region62: #{_rgcn_pallas.1} parent=43 // pred_check_branch
        %2374 = sbr.rel (%p2371) target = $region64
      $region63: #{_rgcn_pallas.1} parent=43 // pred_region
        %v2375 = vld [vmem:[%s375] sm:$0xff]
        %v2376 = vld [vmem:[%s375 + $0x8] sm:$0xff]
        %v2377 = vld [vmem:[%s375 + $0x10] sm:$0xff]
        %v2378 = vld [vmem:[%s375 + $0x18] sm:$0xff]
        %v2379 = vld [vmem:[%s375 + $0x20] sm:$0xff]
        %v2380 = vld [vmem:[%s375 + $0x28] sm:$0xff]
        %v2381 = vld [vmem:[%s375 + $0x30] sm:$0xff]
        %v2382 = vld [vmem:[%s375 + $0x38] sm:$0xff]
        %v2383 = vld [vmem:[%s375 + $0x40] sm:$0xff]
        %v2384 = vld [vmem:[%s375 + $0x48] sm:$0xff]
        %v2385 = vld [vmem:[%s375 + $0x50] sm:$0xff]
        %v2386 = vld [vmem:[%s375 + $0x58] sm:$0xff]
        %v2387 = vld [vmem:[%s375 + $0x60] sm:$0xff]
        %v2388 = vld [vmem:[%s375 + $0x68] sm:$0xff]
        %v2389 = vld [vmem:[%s375 + $0x70] sm:$0xff]
        %v2390 = vld [vmem:[%s375 + $0x78] sm:$0xff]
        %v2391 = vld [vmem:[%s375 + $0x80] sm:$0xff]
        %v2392 = vld [vmem:[%s375 + $0x88] sm:$0xff]
        %v2393 = vld [vmem:[%s375 + $0x90] sm:$0xff]
        %v2394 = vld [vmem:[%s375 + $0x98] sm:$0xff]
        %v2395 = vld [vmem:[%s375 + $0xa0] sm:$0xff]
        %v2396 = vld [vmem:[%s375 + $0xa8] sm:$0xff]
        %v2397 = vld [vmem:[%s375 + $0xb0] sm:$0xff]
        %v2398 = vld [vmem:[%s375 + $0xb8] sm:$0xff]
        %v2399 = vld [vmem:[%s375 + $0xc0] sm:$0xff]
        %v2400 = vld [vmem:[%s375 + $0xc8] sm:$0xff]
        %v2401 = vld [vmem:[%s375 + $0xd0] sm:$0xff]
        %v2402 = vld [vmem:[%s375 + $0xd8] sm:$0xff]
        %v2403 = vld [vmem:[%s375 + $0xe0] sm:$0xff]
        %v2404 = vld [vmem:[%s375 + $0xe8] sm:$0xff]
        %v2405 = vld [vmem:[%s375 + $0xf0] sm:$0xff]
        %v2406 = vld [vmem:[%s375 + $0xf8] sm:$0xff]
        %v2407 = vmax.f32 %v2375, 0.0
        %v2408 = vmax.f32 %v2376, 0.0
        %v2409 = vmax.f32 %v2377, 0.0
        %v2410 = vmax.f32 %v2378, 0.0
        %v2411 = vmax.f32 %v2379, 0.0
        %v2412 = vmax.f32 %v2380, 0.0
        %v2413 = vmax.f32 %v2381, 0.0
        %v2414 = vmax.f32 %v2382, 0.0
        %v2415 = vmax.f32 %v2383, 0.0
        %v2416 = vmax.f32 %v2384, 0.0
        %v2417 = vmax.f32 %v2385, 0.0
        %v2418 = vmax.f32 %v2386, 0.0
        %v2419 = vmax.f32 %v2387, 0.0
        %v2420 = vmax.f32 %v2388, 0.0
        %v2421 = vmax.f32 %v2389, 0.0
        %v2422 = vmax.f32 %v2390, 0.0
        %v2423 = vmax.f32 %v2391, 0.0
        %v2424 = vmax.f32 %v2392, 0.0
        %v2425 = vmax.f32 %v2393, 0.0
        %v2426 = vmax.f32 %v2394, 0.0
        %v2427 = vmax.f32 %v2395, 0.0
        %v2428 = vmax.f32 %v2396, 0.0
        %v2429 = vmax.f32 %v2397, 0.0
        %v2430 = vmax.f32 %v2398, 0.0
        %v2431 = vmax.f32 %v2399, 0.0
        %v2432 = vmax.f32 %v2400, 0.0
        %v2433 = vmax.f32 %v2401, 0.0
        %v2434 = vmax.f32 %v2402, 0.0
        %v2435 = vmax.f32 %v2403, 0.0
        %v2436 = vmax.f32 %v2404, 0.0
        %v2437 = vmax.f32 %v2405, 0.0
        %v2438 = vmax.f32 %v2406, 0.0
        %2439 = vst [vmem:[%s375] sm:$0xff] %v2407
        %2440 = vst [vmem:[%s375 + $0x8] sm:$0xff] %v2408
        %2441 = vst [vmem:[%s375 + $0x10] sm:$0xff] %v2409
        %2442 = vst [vmem:[%s375 + $0x18] sm:$0xff] %v2410
        %2443 = vst [vmem:[%s375 + $0x20] sm:$0xff] %v2411
        %2444 = vst [vmem:[%s375 + $0x28] sm:$0xff] %v2412
        %2445 = vst [vmem:[%s375 + $0x30] sm:$0xff] %v2413
        %2446 = vst [vmem:[%s375 + $0x38] sm:$0xff] %v2414
        %2447 = vst [vmem:[%s375 + $0x40] sm:$0xff] %v2415
        %2448 = vst [vmem:[%s375 + $0x48] sm:$0xff] %v2416
        %2449 = vst [vmem:[%s375 + $0x50] sm:$0xff] %v2417
        %2450 = vst [vmem:[%s375 + $0x58] sm:$0xff] %v2418
        %2451 = vst [vmem:[%s375 + $0x60] sm:$0xff] %v2419
        %2452 = vst [vmem:[%s375 + $0x68] sm:$0xff] %v2420
        %2453 = vst [vmem:[%s375 + $0x70] sm:$0xff] %v2421
        %2454 = vst [vmem:[%s375 + $0x78] sm:$0xff] %v2422
        %2455 = vst [vmem:[%s375 + $0x80] sm:$0xff] %v2423
        %2456 = vst [vmem:[%s375 + $0x88] sm:$0xff] %v2424
        %2457 = vst [vmem:[%s375 + $0x90] sm:$0xff] %v2425
        %2458 = vst [vmem:[%s375 + $0x98] sm:$0xff] %v2426
        %2459 = vst [vmem:[%s375 + $0xa0] sm:$0xff] %v2427
        %2460 = vst [vmem:[%s375 + $0xa8] sm:$0xff] %v2428
        %2461 = vst [vmem:[%s375 + $0xb0] sm:$0xff] %v2429
        %2462 = vst [vmem:[%s375 + $0xb8] sm:$0xff] %v2430
        %2463 = vst [vmem:[%s375 + $0xc0] sm:$0xff] %v2431
        %2464 = vst [vmem:[%s375 + $0xc8] sm:$0xff] %v2432
        %2465 = vst [vmem:[%s375 + $0xd0] sm:$0xff] %v2433
        %2466 = vst [vmem:[%s375 + $0xd8] sm:$0xff] %v2434
        %2467 = vst [vmem:[%s375 + $0xe0] sm:$0xff] %v2435
        %2468 = vst [vmem:[%s375 + $0xe8] sm:$0xff] %v2436
        %2469 = vst [vmem:[%s375 + $0xf0] sm:$0xff] %v2437
        %2470 = vst [vmem:[%s375 + $0xf8] sm:$0xff] %v2438
      $region64: #{_rgcn_pallas.1} parent=43 // pred_fallthru
        _
      %s2471 = smul.u32 32, %s43
      %p2472 = scmp.lt.s32.totalorder %s2471, 63
      %s2473 = scalar_select %p2472, %s2471, 63
      %s2474 = smul.addr %s2473, 8
      %s2475 = scalar_lea.vmem %s9, %s2474
      // Predicated region
      $region65: #{_rgcn_pallas.1} parent=43 // pred_check
        %p2476 = pneg %p226
      $region66: #{_rgcn_pallas.1} parent=43 // pred_check_branch
        %2478 = sbr.rel (%p2476) target = $region68
      $region67: #{_rgcn_pallas.1} parent=43 // pred_region
        %s2479 = smul.u32 32, %s43
      $region68: #{_rgcn_pallas.1} parent=43 // pred_fallthru
        _
    $region44: #{_rgcn_pallas.1} parent=5 // pred_fallthru
      _
    %p2480 = scmp.le.s32.totalorder 2, %s33
    // Predicated region
    $region69: #{_rgcn_pallas.1} parent=5 // pred_check
      %p2481 = pneg %p2480
    $region70: #{_rgcn_pallas.1} parent=5 // pred_check_branch
      %2483 = sbr.rel (%p2481) target = $region72
    $region71: #{_rgcn_pallas.1} parent=5 // pred_region
      %s2484 = ssub.s32 %s33, 2
      // Predicated region
      $region73: #{_rgcn_pallas.1} parent=71 // pred_check
        %p2485 = pneg %p232
      $region74: #{_rgcn_pallas.1} parent=71 // pred_check_branch
        %2487 = sbr.rel (%p2485) target = $region76
      $region75: #{_rgcn_pallas.1} parent=71 // pred_region
        %s2488 = smul.u32 32, %s46
        %p2489 = scmp.lt.s32.totalorder %s2488, 63
        %s2490 = scalar_select %p2489, %s2488, 63
        %s2491 = smul.addr %s2490, 8
        %s2492 = scalar_lea.vmem %s9, %s2491
      $region76: #{_rgcn_pallas.1} parent=71 // pred_fallthru
        _
    $region72: #{_rgcn_pallas.1} parent=5 // pred_fallthru
      _
  $region6: #{_rgcn_pallas.1} parent=0 // loop_footer
    %s37 = sadd.s32 1, %s33
  $region7: #{_rgcn_pallas.1} parent=0 // loop_footer_branch
    %32 = sbr.rel target = $region3
  $region8: #{_rgcn_pallas.1} parent=0 // loop_exit
    _

</llo_original>
